<compile_context>
chip_gen: v7x
topology: tpu7x:2x2x1
jax: 0.10.0
libtpu: 0.0.40
codegen_flags: <defaults>
</compile_context>

<pallas_src>
import numpy as np
import jax
import jax.numpy as jnp
from jax.experimental import pallas as pl
from jax.experimental.pallas import tpu as pltpu


def _row_tile(m):
    """Largest clean row tile (multiple of 8) that divides m; else whole m."""
    for t in (512, 256, 128):
        if m % t == 0:
            return t
    return m


# ---------------- Pallas kernels (hot path) ----------------

def conv_pool_kernel(ae_ref, ao_ref, we_ref, wo_ref, b_ref, o_ref):
    """Fused conv (as matmul) + bias + ReLU + 2x2 max-pool.

    ae/ao : row-im2col patches for even/odd conv-output rows, (tm, K).
    we/wo : structured conv weights producing even/odd conv-output columns,
            packed (K, Wp*Cout).  max over the four products == 2x2 max-pool
            (ReLU/bias commute with the max since bias is shared).
    """
    ae = ae_ref[...]
    ao = ao_ref[...]
    we = we_ref[...]
    wo = wo_ref[...]
    m = jnp.maximum(
        jnp.maximum(jnp.dot(ae, we, preferred_element_type=jnp.float32),
                    jnp.dot(ae, wo, preferred_element_type=jnp.float32)),
        jnp.maximum(jnp.dot(ao, we, preferred_element_type=jnp.float32),
                    jnp.dot(ao, wo, preferred_element_type=jnp.float32)))
    o_ref[...] = jnp.maximum(m + b_ref[...], 0.0)


def conv_pool(a_even, a_odd, w_even, w_odd, bias_row):
    M, K = a_even.shape
    N = w_even.shape[1]
    tm = _row_tile(M)
    return pl.pallas_call(
        conv_pool_kernel,
        out_shape=jax.ShapeDtypeStruct((M, N), jnp.float32),
        grid=(M // tm,),
        in_specs=[
            pl.BlockSpec((tm, K), lambda i: (i, 0)),
            pl.BlockSpec((tm, K), lambda i: (i, 0)),
            pl.BlockSpec((K, N), lambda i: (0, 0)),
            pl.BlockSpec((K, N), lambda i: (0, 0)),
            pl.BlockSpec((1, N), lambda i: (0, 0)),
        ],
        out_specs=pl.BlockSpec((tm, N), lambda i: (i, 0)),
        compiler_params=pltpu.CompilerParams(
            dimension_semantics=("parallel",)),
    )(a_even, a_odd, w_even, w_odd, bias_row)


def mlp_head_kernel(x_ref, w1_ref, b1_ref, w2_ref, b2_ref, w3_ref, b3_ref, o_ref):
    h = jnp.dot(x_ref[...], w1_ref[...], preferred_element_type=jnp.float32)
    h = jnp.maximum(h + b1_ref[...], 0.0)
    # TODO(synk): nn.Dropout(0.5) only acts in training mode; inference forward is identity.
    h = jnp.dot(h.astype(w2_ref.dtype), w2_ref[...], preferred_element_type=jnp.float32)
    h = jnp.maximum(h + b2_ref[...], 0.0)
    h = jnp.dot(h.astype(w3_ref.dtype), w3_ref[...], preferred_element_type=jnp.float32)
    o_ref[...] = h + b3_ref[...]


def mlp_head(x, w1, b1, w2, b2, w3, b3):
    B, K = x.shape
    H1, H2, N = w1.shape[1], w2.shape[1], w3.shape[1]
    tb = _row_tile(B)
    return pl.pallas_call(
        mlp_head_kernel,
        out_shape=jax.ShapeDtypeStruct((B, N), jnp.float32),
        grid=(B // tb,),
        in_specs=[
            pl.BlockSpec((tb, K), lambda i: (i, 0)),
            pl.BlockSpec((K, H1), lambda i: (0, 0)),
            pl.BlockSpec((1, H1), lambda i: (0, 0)),
            pl.BlockSpec((H1, H2), lambda i: (0, 0)),
            pl.BlockSpec((1, H2), lambda i: (0, 0)),
            pl.BlockSpec((H2, N), lambda i: (0, 0)),
            pl.BlockSpec((1, N), lambda i: (0, 0)),
        ],
        out_specs=pl.BlockSpec((tb, N), lambda i: (i, 0)),
        compiler_params=pltpu.CompilerParams(
            dimension_semantics=("parallel",)),
    )(x, w1, b1, w2, b2, w3, b3)


# ---------------- One-time weight repacking (done once, outside forward) ----

def _conv_pool_weight(w_oihw, in_w, pooled_w, dx):
    """PyTorch (O, I, k, k) conv weight -> (k*in_w*I, pooled_w*O) matrix.

    Row index  = kh*(in_w*I) + iw*I + i  (matches the row-im2col layout).
    Col index  = pw*O + o  and computes the conv at output column 2*pw + dx,
    so an (even, odd) pair of these matrices lets the kernel pool over width.
    """
    O, I, K, _ = w_oihw.shape
    sel = np.zeros((in_w, K, pooled_w), np.float32)
    for pw in range(pooled_w):
        for kw in range(K):
            sel[2 * pw + dx + kw, kw, pw] = 1.0
    m5 = jnp.einsum("oihw,xwp->hxipo", w_oihw, jnp.asarray(sel))
    return m5.reshape(K * in_w * I, pooled_w * O)


def prepare_params(params, compute_dtype=jnp.float32):
    """Repack PyTorch-layout params into kernel-ready matrices (runs once)."""
    dt = compute_dtype
    c1w = params["conv1_w"].astype(jnp.float32)
    c2w = params["conv2_w"].astype(jnp.float32)

    # Bake the NHWC(h,w,c) -> NCHW(c,h,w) flatten permutation into fc1_w.
    perm = np.empty(16 * 5 * 5, np.int32)
    for h in range(5):
        for w in range(5):
            for c in range(16):
                perm[h * 80 + w * 16 + c] = c * 25 + h * 5 + w

    return {
        "w1_even": _conv_pool_weight(c1w, 32, 14, 0).astype(dt),
        "w1_odd":  _conv_pool_weight(c1w, 32, 14, 1).astype(dt),
        "b1_row":  jnp.tile(params["conv1_b"].reshape(1, -1), (1, 14)).astype(jnp.float32),
        "w2_even": _conv_pool_weight(c2w, 14, 5, 0).astype(dt),
        "w2_odd":  _conv_pool_weight(c2w, 14, 5, 1).astype(dt),
        "b2_row":  jnp.tile(params["conv2_b"].reshape(1, -1), (1, 5)).astype(jnp.float32),
        "fc1_w":   params["fc1_w"][jnp.asarray(perm), :].astype(dt),
        "fc1_b":   params["fc1_b"].astype(jnp.float32),
        "fc2_w":   params["fc2_w"].astype(dt),
        "fc2_b":   params["fc2_b"].astype(jnp.float32),
        "fc3_w":   params["fc3_w"].astype(dt),
        "fc3_b":   params["fc3_b"].astype(jnp.float32),
    }


# ---------------- Forward (thin glue around 3 pallas_calls) -----------------

def _pool_rows(x, dy, k, out_h):
    """Row-wise im2col for even (dy=0) / odd (dy=1) conv-output rows.

    x: (B, H, W*C) -> (B*out_h, k*W*C); row = b*out_h + ph,
    column = kh*(W*C) + w*C + c, sampling input rows 2*ph + dy + kh.
    """
    B, _, wc = x.shape
    parts = [x[:, dy + kh: dy + kh + 2 * out_h - 1: 2, :] for kh in range(k)]
    return jnp.concatenate(parts, axis=-1).reshape(B * out_h, k * wc)


def lenet_forward(x_nchw, kp):
    B = x_nchw.shape[0]
    dt = kp["w1_even"].dtype

    # NCHW -> NHWC, pad=2, pack as (B, H, W*C): tiny data-movement glue.
    x = jnp.transpose(x_nchw, (0, 2, 3, 1))
    x = jnp.pad(x, ((0, 0), (2, 2), (2, 2), (0, 0)))
    _, H, W, C = x.shape
    x = x.reshape(B, H, W * C).astype(dt)

    # conv1 + bias + ReLU + pool1 -> (B*14, 14*6), rows=(b,ph), cols=(pw,c)
    p1 = conv_pool(_pool_rows(x, 0, 5, 14), _pool_rows(x, 1, 5, 14),
                   kp["w1_even"], kp["w1_odd"], kp["b1_row"])
    p1 = p1.reshape(B, 14, 14 * 6).astype(dt)

    # conv2 + bias + ReLU + pool2 -> (B*5, 5*16)
    p2 = conv_pool(_pool_rows(p1, 0, 5, 5), _pool_rows(p1, 1, 5, 5),
                   kp["w2_even"], kp["w2_odd"], kp["b2_row"])

    # Flatten is a free reshape; NCHW flatten order is baked into fc1_w.
    feat = p2.reshape(B, 16 * 5 * 5).astype(dt)
    return mlp_head(feat, kp["fc1_w"], kp["fc1_b"], kp["fc2_w"], kp["fc2_b"],
                    kp["fc3_w"], kp["fc3_b"])


# ---------------- Parameter init (PyTorch layouts) ---------------------------

def init_params(key, num_classes=10, input_channels=1):
    ks = jax.random.split(key, 10)

    def nrm(k, shape, scale):
        return jax.random.normal(k, shape, jnp.float32) * scale

    return {
        # conv weights in PyTorch OIHW layout
        "conv1_w": nrm(ks[0], (6, input_channels, 5, 5), 0.1),
        "conv1_b": nrm(ks[1], (6,), 0.1),
        "conv2_w": nrm(ks[2], (16, 6, 5, 5), 0.1),
        "conv2_b": nrm(ks[3], (16,), 0.1),
        # FC weights stored as (in, out) == torch weight.T, rows in torch
        # flatten (c, h, w) order for fc1.
        "fc1_w": nrm(ks[4], (400, 120), 0.05),
        "fc1_b": nrm(ks[5], (1, 120), 0.05),
        "fc2_w": nrm(ks[6], (120, 84), 0.05),
        "fc2_b": nrm(ks[7], (1, 84), 0.05),
        "fc3_w": nrm(ks[8], (84, num_classes), 0.05),
        "fc3_b": nrm(ks[9], (1, num_classes), 0.05),
    }


if __name__ == "__main__":
    key = jax.random.PRNGKey(0)
    pkey, xkey = jax.random.split(key)
    params = init_params(pkey)
    # One-time repack: structured conv matrices, bias rows, permuted fc1.
    # (Use compute_dtype=jnp.bfloat16 on v6e/v7x to halve MXU-operand DMA.)
    kparams = prepare_params(params, compute_dtype=jnp.float32)

    # LeNet-5 geometry requires 28x28 inputs (fc1 expects 16*5*5 = 400 feats).
    x = jax.random.normal(xkey, (2, 1, 28, 28), jnp.float32)  # NCHW like PyTorch
    logits = jax.jit(lenet_forward)(x, kparams)
    jax.block_until_ready(logits)
    assert logits.shape == (2, 10) and logits.dtype == jnp.float32
    print("KERNEL_OK")
</pallas_src>

<mosaic_0001>
module attributes {stable_mosaic.version = 11 : i64} {
  func.func @conv_pool_kernel(%arg0: i32, %arg1: memref<28x160xf32, #tpu.memory_space<vmem>>, %arg2: memref<28x160xf32, #tpu.memory_space<vmem>>, %arg3: memref<160x84xf32, #tpu.memory_space<vmem>>, %arg4: memref<160x84xf32, #tpu.memory_space<vmem>>, %arg5: memref<1x84xf32, #tpu.memory_space<vmem>>, %arg6: memref<28x84xf32, #tpu.memory_space<vmem>>) attributes {dimension_semantics = [#tpu.dimension_semantics<parallel>], iteration_bounds = array<i64: 1>, scalar_prefetch = 0 : i64, scratch_operands = 0 : i64, tpu.core_type = #tpu.core_type<tc>, window_params = [{transform_indices = @transform_0, window_bounds = array<i64: 28, 160>}, {transform_indices = @transform_1, window_bounds = array<i64: 28, 160>}, {pipeline_mode = #tpu.pipeline_mode<synchronous>, transform_indices = @transform_2, window_bounds = array<i64: 160, 84>}, {pipeline_mode = #tpu.pipeline_mode<synchronous>, transform_indices = @transform_3, window_bounds = array<i64: 160, 84>}, {pipeline_mode = #tpu.pipeline_mode<synchronous>, transform_indices = @transform_4, window_bounds = array<i64: 1, 84>}, {transform_indices = @transform_5, window_bounds = array<i64: 28, 84>}]} {
    %c0 = arith.constant 0 : index
    %c0_0 = arith.constant 0 : index
    %0 = vector.load %arg1[%c0, %c0_0] : memref<28x160xf32, #tpu.memory_space<vmem>>, vector<28x160xf32>
    %c0_1 = arith.constant 0 : index
    %c0_2 = arith.constant 0 : index
    %1 = vector.load %arg2[%c0_1, %c0_2] : memref<28x160xf32, #tpu.memory_space<vmem>>, vector<28x160xf32>
    %c0_3 = arith.constant 0 : index
    %c0_4 = arith.constant 0 : index
    %2 = vector.load %arg3[%c0_3, %c0_4] : memref<160x84xf32, #tpu.memory_space<vmem>>, vector<160x84xf32>
    %c0_5 = arith.constant 0 : index
    %c0_6 = arith.constant 0 : index
    %3 = vector.load %arg4[%c0_5, %c0_6] : memref<160x84xf32, #tpu.memory_space<vmem>>, vector<160x84xf32>
    %cst = arith.constant dense<0.000000e+00> : vector<28x84xf32>
    %4 = tpu.matmul %0, %2, %cst {dimension_numbers = #tpu.dot_dimension_numbers<[1], [0], [0], [1], [0, 0, 1, 1], [], []>} : vector<28x160xf32>, vector<160x84xf32>, vector<28x84xf32> -> vector<28x84xf32>
    %cst_7 = arith.constant dense<0.000000e+00> : vector<28x84xf32>
    %5 = tpu.matmul %0, %3, %cst_7 {dimension_numbers = #tpu.dot_dimension_numbers<[1], [0], [0], [1], [0, 0, 1, 1], [], []>} : vector<28x160xf32>, vector<160x84xf32>, vector<28x84xf32> -> vector<28x84xf32>
    %6 = arith.maximumf %4, %5 : vector<28x84xf32>
    %cst_8 = arith.constant dense<0.000000e+00> : vector<28x84xf32>
    %7 = tpu.matmul %1, %2, %cst_8 {dimension_numbers = #tpu.dot_dimension_numbers<[1], [0], [0], [1], [0, 0, 1, 1], [], []>} : vector<28x160xf32>, vector<160x84xf32>, vector<28x84xf32> -> vector<28x84xf32>
    %cst_9 = arith.constant dense<0.000000e+00> : vector<28x84xf32>
    %8 = tpu.matmul %1, %3, %cst_9 {dimension_numbers = #tpu.dot_dimension_numbers<[1], [0], [0], [1], [0, 0, 1, 1], [], []>} : vector<28x160xf32>, vector<160x84xf32>, vector<28x84xf32> -> vector<28x84xf32>
    %9 = arith.maximumf %7, %8 : vector<28x84xf32>
    %10 = arith.maximumf %6, %9 : vector<28x84xf32>
    %c0_10 = arith.constant 0 : index
    %c0_11 = arith.constant 0 : index
    %11 = vector.load %arg5[%c0_10, %c0_11] : memref<1x84xf32, #tpu.memory_space<vmem>>, vector<1x84xf32>
    %12 = vector.broadcast %11 : vector<1x84xf32> to vector<28x84xf32>
    %13 = arith.addf %10, %12 : vector<28x84xf32>
    %cst_12 = arith.constant 0.000000e+00 : f32
    %14 = vector.broadcast %cst_12 : f32 to vector<28x84xf32>
    %15 = arith.maximumf %13, %14 : vector<28x84xf32>
    %c0_13 = arith.constant 0 : index
    %c0_14 = arith.constant 0 : index
    %16 = vector.load %arg6[%c0_13, %c0_14] : memref<28x84xf32, #tpu.memory_space<vmem>>, vector<28x84xf32>
    tpu.vector_store %arg6[%c0_13, %c0_14], %15 {strides = array<i32>} : memref<28x84xf32, #tpu.memory_space<vmem>>, vector<28x84xf32>,
    return
  }
  func.func @transform_0(%arg0: i32) -> (i32, i32) {
    %c0_i32 = arith.constant 0 : i32
    %c0_i32_0 = arith.constant 0 : i32
    return %arg0, %c0_i32 : i32, i32
  }
  func.func @transform_1(%arg0: i32) -> (i32, i32) {
    %c0_i32 = arith.constant 0 : i32
    %c0_i32_0 = arith.constant 0 : i32
    return %arg0, %c0_i32 : i32, i32
  }
  func.func @transform_2(%arg0: i32) -> (i32, i32) {
    %c0_i32 = arith.constant 0 : i32
    %c0_i32_0 = arith.constant 0 : i32
    %c0_i32_1 = arith.constant 0 : i32
    return %c0_i32, %c0_i32_0 : i32, i32
  }
  func.func @transform_3(%arg0: i32) -> (i32, i32) {
    %c0_i32 = arith.constant 0 : i32
    %c0_i32_0 = arith.constant 0 : i32
    %c0_i32_1 = arith.constant 0 : i32
    return %c0_i32, %c0_i32_0 : i32, i32
  }
  func.func @transform_4(%arg0: i32) -> (i32, i32) {
    %c0_i32 = arith.constant 0 : i32
    %c0_i32_0 = arith.constant 0 : i32
    %c0_i32_1 = arith.constant 0 : i32
    return %c0_i32, %c0_i32_0 : i32, i32
  }
  func.func @transform_5(%arg0: i32) -> (i32, i32) {
    %c0_i32 = arith.constant 0 : i32
    %c0_i32_0 = arith.constant 0 : i32
    return %arg0, %c0_i32 : i32, i32
  }
}

module attributes {stable_mosaic.version = 11 : i64} {
  func.func @conv_pool_kernel(%arg0: i32, %arg1: memref<10x420xf32, #tpu.memory_space<vmem>>, %arg2: memref<10x420xf32, #tpu.memory_space<vmem>>, %arg3: memref<420x80xf32, #tpu.memory_space<vmem>>, %arg4: memref<420x80xf32, #tpu.memory_space<vmem>>, %arg5: memref<1x80xf32, #tpu.memory_space<vmem>>, %arg6: memref<10x80xf32, #tpu.memory_space<vmem>>) attributes {dimension_semantics = [#tpu.dimension_semantics<parallel>], iteration_bounds = array<i64: 1>, scalar_prefetch = 0 : i64, scratch_operands = 0 : i64, tpu.core_type = #tpu.core_type<tc>, window_params = [{transform_indices = @transform_0, window_bounds = array<i64: 10, 420>}, {transform_indices = @transform_1, window_bounds = array<i64: 10, 420>}, {pipeline_mode = #tpu.pipeline_mode<synchronous>, transform_indices = @transform_2, window_bounds = array<i64: 420, 80>}, {pipeline_mode = #tpu.pipeline_mode<synchronous>, transform_indices = @transform_3, window_bounds = array<i64: 420, 80>}, {pipeline_mode = #tpu.pipeline_mode<synchronous>, transform_indices = @transform_4, window_bounds = array<i64: 1, 80>}, {transform_indices = @transform_5, window_bounds = array<i64: 10, 80>}]} {
    %c0 = arith.constant 0 : index
    %c0_0 = arith.constant 0 : index
    %0 = vector.load %arg1[%c0, %c0_0] : memref<10x420xf32, #tpu.memory_space<vmem>>, vector<10x420xf32>
    %c0_1 = arith.constant 0 : index
    %c0_2 = arith.constant 0 : index
    %1 = vector.load %arg2[%c0_1, %c0_2] : memref<10x420xf32, #tpu.memory_space<vmem>>, vector<10x420xf32>
    %c0_3 = arith.constant 0 : index
    %c0_4 = arith.constant 0 : index
    %2 = vector.load %arg3[%c0_3, %c0_4] : memref<420x80xf32, #tpu.memory_space<vmem>>, vector<420x80xf32>
    %c0_5 = arith.constant 0 : index
    %c0_6 = arith.constant 0 : index
    %3 = vector.load %arg4[%c0_5, %c0_6] : memref<420x80xf32, #tpu.memory_space<vmem>>, vector<420x80xf32>
    %cst = arith.constant dense<0.000000e+00> : vector<10x80xf32>
    %4 = tpu.matmul %0, %2, %cst {dimension_numbers = #tpu.dot_dimension_numbers<[1], [0], [0], [1], [0, 0, 1, 1], [], []>} : vector<10x420xf32>, vector<420x80xf32>, vector<10x80xf32> -> vector<10x80xf32>
    %cst_7 = arith.constant dense<0.000000e+00> : vector<10x80xf32>
    %5 = tpu.matmul %0, %3, %cst_7 {dimension_numbers = #tpu.dot_dimension_numbers<[1], [0], [0], [1], [0, 0, 1, 1], [], []>} : vector<10x420xf32>, vector<420x80xf32>, vector<10x80xf32> -> vector<10x80xf32>
    %6 = arith.maximumf %4, %5 : vector<10x80xf32>
    %cst_8 = arith.constant dense<0.000000e+00> : vector<10x80xf32>
    %7 = tpu.matmul %1, %2, %cst_8 {dimension_numbers = #tpu.dot_dimension_numbers<[1], [0], [0], [1], [0, 0, 1, 1], [], []>} : vector<10x420xf32>, vector<420x80xf32>, vector<10x80xf32> -> vector<10x80xf32>
    %cst_9 = arith.constant dense<0.000000e+00> : vector<10x80xf32>
    %8 = tpu.matmul %1, %3, %cst_9 {dimension_numbers = #tpu.dot_dimension_numbers<[1], [0], [0], [1], [0, 0, 1, 1], [], []>} : vector<10x420xf32>, vector<420x80xf32>, vector<10x80xf32> -> vector<10x80xf32>
    %9 = arith.maximumf %7, %8 : vector<10x80xf32>
    %10 = arith.maximumf %6, %9 : vector<10x80xf32>
    %c0_10 = arith.constant 0 : index
    %c0_11 = arith.constant 0 : index
    %11 = vector.load %arg5[%c0_10, %c0_11] : memref<1x80xf32, #tpu.memory_space<vmem>>, vector<1x80xf32>
    %12 = vector.broadcast %11 : vector<1x80xf32> to vector<10x80xf32>
    %13 = arith.addf %10, %12 : vector<10x80xf32>
    %cst_12 = arith.constant 0.000000e+00 : f32
    %14 = vector.broadcast %cst_12 : f32 to vector<10x80xf32>
    %15 = arith.maximumf %13, %14 : vector<10x80xf32>
    %c0_13 = arith.constant 0 : index
    %c0_14 = arith.constant 0 : index
    %16 = vector.load %arg6[%c0_13, %c0_14] : memref<10x80xf32, #tpu.memory_space<vmem>>, vector<10x80xf32>
    tpu.vector_store %arg6[%c0_13, %c0_14], %15 {strides = array<i32>} : memref<10x80xf32, #tpu.memory_space<vmem>>, vector<10x80xf32>,
    return
  }
  func.func @transform_0(%arg0: i32) -> (i32, i32) {
    %c0_i32 = arith.constant 0 : i32
    %c0_i32_0 = arith.constant 0 : i32
    return %arg0, %c0_i32 : i32, i32
  }
  func.func @transform_1(%arg0: i32) -> (i32, i32) {
    %c0_i32 = arith.constant 0 : i32
    %c0_i32_0 = arith.constant 0 : i32
    return %arg0, %c0_i32 : i32, i32
  }
  func.func @transform_2(%arg0: i32) -> (i32, i32) {
    %c0_i32 = arith.constant 0 : i32
    %c0_i32_0 = arith.constant 0 : i32
    %c0_i32_1 = arith.constant 0 : i32
    return %c0_i32, %c0_i32_0 : i32, i32
  }
  func.func @transform_3(%arg0: i32) -> (i32, i32) {
    %c0_i32 = arith.constant 0 : i32
    %c0_i32_0 = arith.constant 0 : i32
    %c0_i32_1 = arith.constant 0 : i32
    return %c0_i32, %c0_i32_0 : i32, i32
  }
  func.func @transform_4(%arg0: i32) -> (i32, i32) {
    %c0_i32 = arith.constant 0 : i32
    %c0_i32_0 = arith.constant 0 : i32
    %c0_i32_1 = arith.constant 0 : i32
    return %c0_i32, %c0_i32_0 : i32, i32
  }
  func.func @transform_5(%arg0: i32) -> (i32, i32) {
    %c0_i32 = arith.constant 0 : i32
    %c0_i32_0 = arith.constant 0 : i32
    return %arg0, %c0_i32 : i32, i32
  }
}

module attributes {stable_mosaic.version = 11 : i64} {
  func.func @mlp_head_kernel(%arg0: i32, %arg1: memref<2x400xf32, #tpu.memory_space<vmem>>, %arg2: memref<400x120xf32, #tpu.memory_space<vmem>>, %arg3: memref<1x120xf32, #tpu.memory_space<vmem>>, %arg4: memref<120x84xf32, #tpu.memory_space<vmem>>, %arg5: memref<1x84xf32, #tpu.memory_space<vmem>>, %arg6: memref<84x10xf32, #tpu.memory_space<vmem>>, %arg7: memref<1x10xf32, #tpu.memory_space<vmem>>, %arg8: memref<2x10xf32, #tpu.memory_space<vmem>>) attributes {dimension_semantics = [#tpu.dimension_semantics<parallel>], iteration_bounds = array<i64: 1>, scalar_prefetch = 0 : i64, scratch_operands = 0 : i64, tpu.core_type = #tpu.core_type<tc>, window_params = [{transform_indices = @transform_0, window_bounds = array<i64: 2, 400>}, {pipeline_mode = #tpu.pipeline_mode<synchronous>, transform_indices = @transform_1, window_bounds = array<i64: 400, 120>}, {pipeline_mode = #tpu.pipeline_mode<synchronous>, transform_indices = @transform_2, window_bounds = array<i64: 1, 120>}, {pipeline_mode = #tpu.pipeline_mode<synchronous>, transform_indices = @transform_3, window_bounds = array<i64: 120, 84>}, {pipeline_mode = #tpu.pipeline_mode<synchronous>, transform_indices = @transform_4, window_bounds = array<i64: 1, 84>}, {pipeline_mode = #tpu.pipeline_mode<synchronous>, transform_indices = @transform_5, window_bounds = array<i64: 84, 10>}, {pipeline_mode = #tpu.pipeline_mode<synchronous>, transform_indices = @transform_6, window_bounds = array<i64: 1, 10>}, {transform_indices = @transform_7, window_bounds = array<i64: 2, 10>}]} {
    %c0 = arith.constant 0 : index
    %c0_0 = arith.constant 0 : index
    %0 = vector.load %arg1[%c0, %c0_0] : memref<2x400xf32, #tpu.memory_space<vmem>>, vector<2x400xf32>
    %c0_1 = arith.constant 0 : index
    %c0_2 = arith.constant 0 : index
    %1 = vector.load %arg2[%c0_1, %c0_2] : memref<400x120xf32, #tpu.memory_space<vmem>>, vector<400x120xf32>
    %cst = arith.constant dense<0.000000e+00> : vector<2x120xf32>
    %2 = tpu.matmul %0, %1, %cst {dimension_numbers = #tpu.dot_dimension_numbers<[1], [0], [0], [1], [0, 0, 1, 1], [], []>} : vector<2x400xf32>, vector<400x120xf32>, vector<2x120xf32> -> vector<2x120xf32>
    %c0_3 = arith.constant 0 : index
    %c0_4 = arith.constant 0 : index
    %3 = vector.load %arg3[%c0_3, %c0_4] : memref<1x120xf32, #tpu.memory_space<vmem>>, vector<1x120xf32>
    %4 = vector.broadcast %3 : vector<1x120xf32> to vector<2x120xf32>
    %5 = arith.addf %2, %4 : vector<2x120xf32>
    %cst_5 = arith.constant 0.000000e+00 : f32
    %6 = vector.broadcast %cst_5 : f32 to vector<2x120xf32>
    %7 = arith.maximumf %5, %6 : vector<2x120xf32>
    %c0_6 = arith.constant 0 : index
    %c0_7 = arith.constant 0 : index
    %8 = vector.load %arg4[%c0_6, %c0_7] : memref<120x84xf32, #tpu.memory_space<vmem>>, vector<120x84xf32>
    %cst_8 = arith.constant dense<0.000000e+00> : vector<2x84xf32>
    %9 = tpu.matmul %7, %8, %cst_8 {dimension_numbers = #tpu.dot_dimension_numbers<[1], [0], [0], [1], [0, 0, 1, 1], [], []>} : vector<2x120xf32>, vector<120x84xf32>, vector<2x84xf32> -> vector<2x84xf32>
    %c0_9 = arith.constant 0 : index
    %c0_10 = arith.constant 0 : index
    %10 = vector.load %arg5[%c0_9, %c0_10] : memref<1x84xf32, #tpu.memory_space<vmem>>, vector<1x84xf32>
    %11 = vector.broadcast %10 : vector<1x84xf32> to vector<2x84xf32>
    %12 = arith.addf %9, %11 : vector<2x84xf32>
    %cst_11 = arith.constant 0.000000e+00 : f32
    %13 = vector.broadcast %cst_11 : f32 to vector<2x84xf32>
    %14 = arith.maximumf %12, %13 : vector<2x84xf32>
    %c0_12 = arith.constant 0 : index
    %c0_13 = arith.constant 0 : index
    %15 = vector.load %arg6[%c0_12, %c0_13] : memref<84x10xf32, #tpu.memory_space<vmem>>, vector<84x10xf32>
    %cst_14 = arith.constant dense<0.000000e+00> : vector<2x10xf32>
    %16 = tpu.matmul %14, %15, %cst_14 {dimension_numbers = #tpu.dot_dimension_numbers<[1], [0], [0], [1], [0, 0, 1, 1], [], []>} : vector<2x84xf32>, vector<84x10xf32>, vector<2x10xf32> -> vector<2x10xf32>
    %c0_15 = arith.constant 0 : index
    %c0_16 = arith.constant 0 : index
    %17 = vector.load %arg7[%c0_15, %c0_16] : memref<1x10xf32, #tpu.memory_space<vmem>>, vector<1x10xf32>
    %18 = vector.broadcast %17 : vector<1x10xf32> to vector<2x10xf32>
    %19 = arith.addf %16, %18 : vector<2x10xf32>
    %c0_17 = arith.constant 0 : index
    %c0_18 = arith.constant 0 : index
    %20 = vector.load %arg8[%c0_17, %c0_18] : memref<2x10xf32, #tpu.memory_space<vmem>>, vector<2x10xf32>
    tpu.vector_store %arg8[%c0_17, %c0_18], %19 {strides = array<i32>} : memref<2x10xf32, #tpu.memory_space<vmem>>, vector<2x10xf32>,
    return
  }
  func.func @transform_0(%arg0: i32) -> (i32, i32) {
    %c0_i32 = arith.constant 0 : i32
    %c0_i32_0 = arith.constant 0 : i32
    return %arg0, %c0_i32 : i32, i32
  }
  func.func @transform_1(%arg0: i32) -> (i32, i32) {
    %c0_i32 = arith.constant 0 : i32
    %c0_i32_0 = arith.constant 0 : i32
    %c0_i32_1 = arith.constant 0 : i32
    return %c0_i32, %c0_i32_0 : i32, i32
  }
  func.func @transform_2(%arg0: i32) -> (i32, i32) {
    %c0_i32 = arith.constant 0 : i32
    %c0_i32_0 = arith.constant 0 : i32
    %c0_i32_1 = arith.constant 0 : i32
    return %c0_i32, %c0_i32_0 : i32, i32
  }
  func.func @transform_3(%arg0: i32) -> (i32, i32) {
    %c0_i32 = arith.constant 0 : i32
    %c0_i32_0 = arith.constant 0 : i32
    %c0_i32_1 = arith.constant 0 : i32
    return %c0_i32, %c0_i32_0 : i32, i32
  }
  func.func @transform_4(%arg0: i32) -> (i32, i32) {
    %c0_i32 = arith.constant 0 : i32
    %c0_i32_0 = arith.constant 0 : i32
    %c0_i32_1 = arith.constant 0 : i32
    return %c0_i32, %c0_i32_0 : i32, i32
  }
  func.func @transform_5(%arg0: i32) -> (i32, i32) {
    %c0_i32 = arith.constant 0 : i32
    %c0_i32_0 = arith.constant 0 : i32
    %c0_i32_1 = arith.constant 0 : i32
    return %c0_i32, %c0_i32_0 : i32, i32
  }
  func.func @transform_6(%arg0: i32) -> (i32, i32) {
    %c0_i32 = arith.constant 0 : i32
    %c0_i32_0 = arith.constant 0 : i32
    %c0_i32_1 = arith.constant 0 : i32
    return %c0_i32, %c0_i32_0 : i32, i32
  }
  func.func @transform_7(%arg0: i32) -> (i32, i32) {
    %c0_i32 = arith.constant 0 : i32
    %c0_i32_0 = arith.constant 0 : i32
    return %arg0, %c0_i32 : i32, i32
  }
}

</mosaic_0001>

<llo_original>
// kernel: lenet_forward.5
$region0: #{lenet_forward.5}
  #allocation0 [shape = 'u32[]', space=smem, size = 0x4, offset = 0x4, fixed_abs, tag = 'smem constant byte address 0x4 - core index']
  #allocation1 [shape = 'u32[144,128]{1,0:T(1,128)}', space=vmem, size = 0x12000, scoped, tag = 'internal scratch']
  %s0 = inlined_call_operand.vmem [shape: f32[2,400], index: 0, kind: input, shape index: {}]
  %s1 = inlined_call_operand.vmem [shape: f32[400,120], index: 1, kind: input, shape index: {}]
  %s2 = inlined_call_operand.vmem [shape: f32[1,120], index: 2, kind: input, shape index: {}]
  %s3 = inlined_call_operand.vmem [shape: f32[120,84], index: 3, kind: input, shape index: {}]
  %s4 = inlined_call_operand.vmem [shape: f32[1,84], index: 4, kind: input, shape index: {}]
  %s5 = inlined_call_operand.vmem [shape: f32[84,10], index: 5, kind: input, shape index: {}]
  %s6 = inlined_call_operand.vmem [shape: f32[1,10], index: 6, kind: input, shape index: {}]
  %s7 = inlined_call_operand.hbm [shape: f32[2,10], index: 7, kind: output, shape index: {}]
  %s8 = sld [smem:[#allocation0]]
  $region38: #{lenet_forward.5} parent=0
    _
  %s10 = ssub.s32 1, %s8
  %s11 = scalar_select 0, %s10, %s8
  $region1: #{lenet_forward.5} parent=0
    #allocation2 [shape = 'u8[1024]{0}', space=vmem, size = 0x400, scoped, tag = 'output window, operand 0, single buffered']
    #allocation3 [shape = 's32[1]{0}', space=sflag, size = 0x4, scoped, tag = 'scoped memory for lenet_forward.5']
    %12 = vsyncpa [#allocation3], 0
    // Predicated region
    $region2: #{lenet_forward.5} parent=1 // pred_check
      _
    $region3: #{lenet_forward.5} parent=1 // pred_check_branch
      %14 = sbr.rel (0) target = $region5
    $region4: #{lenet_forward.5} parent=1 // pred_region
      _
    $region5: #{lenet_forward.5} parent=1 // pred_fallthru
      _
    // Predicated region
    $region6: #{lenet_forward.5} parent=1 // pred_check
      _
    $region7: #{lenet_forward.5} parent=1 // pred_check_branch
      %16 = sbr.rel (0) target = $region9
    $region8: #{lenet_forward.5} parent=1 // pred_region
      _
    $region9: #{lenet_forward.5} parent=1 // pred_fallthru
      _
    // Predicated region
    $region10: #{lenet_forward.5} parent=1 // pred_check
      _
    $region11: #{lenet_forward.5} parent=1 // pred_check_branch
      %18 = sbr.rel (0) target = $region13
    $region12: #{lenet_forward.5} parent=1 // pred_region
      _
    $region13: #{lenet_forward.5} parent=1 // pred_fallthru
      _
    // Predicated region
    $region14: #{lenet_forward.5} parent=1 // pred_check
      _
    $region15: #{lenet_forward.5} parent=1 // pred_check_branch
      %20 = sbr.rel (0) target = $region17
    $region16: #{lenet_forward.5} parent=1 // pred_region
      _
    $region17: #{lenet_forward.5} parent=1 // pred_fallthru
      _
    // Predicated region
    $region18: #{lenet_forward.5} parent=1 // pred_check
      _
    $region19: #{lenet_forward.5} parent=1 // pred_check_branch
      %22 = sbr.rel (0) target = $region21
    $region20: #{lenet_forward.5} parent=1 // pred_region
      _
    $region21: #{lenet_forward.5} parent=1 // pred_fallthru
      _
    // Predicated region
    $region22: #{lenet_forward.5} parent=1 // pred_check
      _
    $region23: #{lenet_forward.5} parent=1 // pred_check_branch
      %24 = sbr.rel (0) target = $region25
    $region24: #{lenet_forward.5} parent=1 // pred_region
      _
    $region25: #{lenet_forward.5} parent=1 // pred_fallthru
      _
    // Predicated region
    $region26: #{lenet_forward.5} parent=1 // pred_check
      _
    $region27: #{lenet_forward.5} parent=1 // pred_check_branch
      %26 = sbr.rel (0) target = $region29
    $region28: #{lenet_forward.5} parent=1 // pred_region
      _
    $region29: #{lenet_forward.5} parent=1 // pred_fallthru
      _
    %v27 = vld [vmem:[%s0] sm:$0xff]
    %v28 = vld [vmem:[%s1] sm:$0xff]
    %v29 = vld [vmem:[%s1 + $0x8] sm:$0xff]
    %v30 = vld [vmem:[%s1 + $0x10] sm:$0xff]
    %v31 = vld [vmem:[%s1 + $0x18] sm:$0xff]
    %v32 = vld [vmem:[%s1 + $0x20] sm:$0xff]
    %v33 = vld [vmem:[%s1 + $0x28] sm:$0xff]
    %v34 = vld [vmem:[%s1 + $0x30] sm:$0xff]
    %v35 = vld [vmem:[%s1 + $0x38] sm:$0xff]
    %v36 = vld [vmem:[%s1 + $0x40] sm:$0xff]
    %v37 = vld [vmem:[%s1 + $0x48] sm:$0xff]
    %v38 = vld [vmem:[%s1 + $0x50] sm:$0xff]
    %v39 = vld [vmem:[%s1 + $0x58] sm:$0xff]
    %v40 = vld [vmem:[%s1 + $0x60] sm:$0xff]
    %v41 = vld [vmem:[%s1 + $0x68] sm:$0xff]
    %v42 = vld [vmem:[%s1 + $0x70] sm:$0xff]
    %v43 = vld [vmem:[%s1 + $0x78] sm:$0xff]
    %v44 = vld [vmem:[%s1 + $0x80] sm:$0xff]
    %v45 = vld [vmem:[%s1 + $0x88] sm:$0xff]
    %v46 = vld [vmem:[%s1 + $0x90] sm:$0xff]
    %v47 = vld [vmem:[%s1 + $0x98] sm:$0xff]
    %v48 = vld [vmem:[%s1 + $0xa0] sm:$0xff]
    %v49 = vld [vmem:[%s1 + $0xa8] sm:$0xff]
    %v50 = vld [vmem:[%s1 + $0xb0] sm:$0xff]
    %v51 = vld [vmem:[%s1 + $0xb8] sm:$0xff]
    %v52 = vld [vmem:[%s1 + $0xc0] sm:$0xff]
    %v53 = vld [vmem:[%s1 + $0xc8] sm:$0xff]
    %v54 = vld [vmem:[%s1 + $0xd0] sm:$0xff]
    %v55 = vld [vmem:[%s1 + $0xd8] sm:$0xff]
    %v56 = vld [vmem:[%s1 + $0xe0] sm:$0xff]
    %v57 = vld [vmem:[%s1 + $0xe8] sm:$0xff]
    %v58 = vld [vmem:[%s1 + $0xf0] sm:$0xff]
    %v59 = vld [vmem:[%s1 + $0xf8] sm:$0xff]
    %v60 = vld [vmem:[%s1 + $0x100] sm:$0xff]
    %v61 = vld [vmem:[%s1 + $0x108] sm:$0xff]
    %v62 = vld [vmem:[%s1 + $0x110] sm:$0xff]
    %v63 = vld [vmem:[%s1 + $0x118] sm:$0xff]
    %v64 = vld [vmem:[%s1 + $0x120] sm:$0xff]
    %v65 = vld [vmem:[%s1 + $0x128] sm:$0xff]
    %v66 = vld [vmem:[%s1 + $0x130] sm:$0xff]
    %v67 = vld [vmem:[%s1 + $0x138] sm:$0xff]
    %v68 = vld [vmem:[%s1 + $0x140] sm:$0xff]
    %v69 = vld [vmem:[%s1 + $0x148] sm:$0xff]
    %v70 = vld [vmem:[%s1 + $0x150] sm:$0xff]
    %v71 = vld [vmem:[%s1 + $0x158] sm:$0xff]
    %v72 = vld [vmem:[%s1 + $0x160] sm:$0xff]
    %v73 = vld [vmem:[%s1 + $0x168] sm:$0xff]
    %v74 = vld [vmem:[%s1 + $0x170] sm:$0xff]
    %v75 = vld [vmem:[%s1 + $0x178] sm:$0xff]
    %v76 = vld [vmem:[%s1 + $0x180] sm:$0xff]
    %v77 = vld [vmem:[%s1 + $0x188] sm:$0xff]
    %v78 = vld [vmem:[%s2] sm:$0x1]
    %v80 = vlaneseq
    %v81 = vshrl.u32 %v80, 7
    %v82 = vsub.s32 0, %v81
    %v83 = vrot.slane %v78, %v82
    %v86 = vcombine.high %v27, %v27
    %v88 = vunpack.c.l.s4 1983009808
    %v89 = vunpack.c.0.s8 %v88
    %v90 = vlaneseq
    %v91 = vshrl.u32 %v90, 7
    %v92 = vsub.s32 %v89, %v91
    %v93 = vrot.slane %v27, %v92
    %v95 = vunpack.c.l.s4 1983009808
    %v96 = vunpack.c.0.s8 %v95
    %v97 = vlaneseq
    %v98 = vshrl.u32 %v97, 7
    %v99 = vsub.s32 %v96, %v98
    %v100 = vrot.slane %v86, %v99
    %v101 = vcombine.high %v93, %v93
    %v102 = vcombine.high %v100, %v100
    %vm106 = vcmask 130048
    %v107 = vsel %vm106, %v102, 0
    %109 = vmatprep.subr.mxu0 0.0
    %110 = vmatpush1.msra.mxu0 %v28
    %111 = vmatprep.subr.mxu0 0.0
    %112 = vmatpush1.msra.mxu0 %v29
    %113 = vmatprep.subr.mxu0 0.0
    %114 = vmatpush1.msra.mxu0 %v30
    %115 = vmatprep.subr.mxu0 0.0
    %116 = vmatpush1.msra.mxu0 %v31
    %117 = vmatprep.subr.mxu0 0.0
    %118 = vmatpush1.msra.mxu0 %v32
    %119 = vmatprep.subr.mxu0 0.0
    %120 = vmatpush1.msra.mxu0 %v33
    %121 = vmatprep.subr.mxu0 0.0
    %122 = vmatpush1.msra.mxu0 %v34
    %123 = vmatprep.subr.mxu0 0.0
    %124 = vmatpush1.msra.mxu0 %v35
    %125 = vmatprep.subr.mxu0 0.0
    %126 = vmatpush1.msra.mxu0 %v36
    %127 = vmatprep.subr.mxu0 0.0
    %128 = vmatpush1.msra.mxu0 %v37
    %129 = vmatprep.subr.mxu0 0.0
    %130 = vmatpush1.msra.mxu0 %v38
    %131 = vmatprep.subr.mxu0 0.0
    %132 = vmatpush1.msra.mxu0 %v39
    %133 = vmatprep.subr.mxu0 0.0
    %134 = vmatpush1.msra.mxu0 %v40
    %135 = vmatprep.subr.mxu0 0.0
    %136 = vmatpush1.msra.mxu0 %v41
    %137 = vmatprep.subr.mxu0 0.0
    %138 = vmatpush1.msra.mxu0 %v42
    %139 = vmatprep.subr.mxu0 0.0
    %140 = vmatpush1.msra.mxu0 %v43
    %141 = vmatprep.subr.mxu0 0.0
    %142 = vmatpush1.msra.mxu0 %v44
    %143 = vmatprep.subr.mxu0 0.0
    %144 = vmatpush1.msra.mxu0 %v45
    %145 = vmatprep.subr.mxu0 0.0
    %146 = vmatpush1.msra.mxu0 %v46
    %147 = vmatprep.subr.mxu0 0.0
    %148 = vmatpush1.msra.mxu0 %v47
    %149 = vmatprep.subr.mxu0 0.0
    %150 = vmatpush1.msra.mxu0 %v48
    %151 = vmatprep.subr.mxu0 0.0
    %152 = vmatpush1.msra.mxu0 %v49
    %153 = vmatprep.subr.mxu0 0.0
    %154 = vmatpush1.msra.mxu0 %v50
    %155 = vmatprep.subr.mxu0 0.0
    %156 = vmatpush1.msra.mxu0 %v51
    %157 = vmatprep.subr.mxu0 0.0
    %158 = vmatpush1.msra.mxu0 %v52
    %159 = vmatprep.subr.mxu0 0.0
    %160 = vmatpush1.msra.mxu0 %v53
    %161 = vmatprep.subr.mxu0 0.0
    %162 = vmatpush1.msra.mxu0 %v54
    %163 = vmatprep.subr.mxu0 0.0
    %164 = vmatpush1.msra.mxu0 %v55
    %165 = vmatprep.subr.mxu0 0.0
    %166 = vmatpush1.msra.mxu0 %v56
    %167 = vmatprep.subr.mxu0 0.0
    %168 = vmatpush1.msra.mxu0 %v57
    %169 = vmatprep.subr.mxu0 0.0
    %170 = vmatpush1.msra.mxu0 %v58
    %171 = vmatprep.subr.mxu0 0.0
    %172 = vmatpush1.msra.mxu0 %v59
    %173 = vmatprep.mubr.f32.mxu0 %v101
    %174 = vmatmul.mubr.f32.gmra.mrb[0].mxu0 %v93
    %v175 = vpop.f32.mrb[0].mxu0
    %v176 = vadd.f32 %v83, %v175
    %v177 = vpop.f32.mrb[0].mxu0
    %178 = vdwg.mxu0
    %179 = vmatprep.subr.mxu0 0.0
    %180 = vmatpush1.msra.mxu0 %v60
    %181 = vmatprep.subr.mxu0 0.0
    %182 = vmatpush1.msra.mxu0 %v61
    %183 = vmatprep.subr.mxu0 0.0
    %184 = vmatpush1.msra.mxu0 %v62
    %185 = vmatprep.subr.mxu0 0.0
    %186 = vmatpush1.msra.mxu0 %v63
    %187 = vmatprep.subr.mxu0 0.0
    %188 = vmatpush1.msra.mxu0 %v64
    %189 = vmatprep.subr.mxu0 0.0
    %190 = vmatpush1.msra.mxu0 %v65
    %191 = vmatprep.subr.mxu0 0.0
    %192 = vmatpush1.msra.mxu0 %v66
    %193 = vmatprep.subr.mxu0 0.0
    %194 = vmatpush1.msra.mxu0 %v67
    %195 = vmatprep.subr.mxu0 0.0
    %196 = vmatpush1.msra.mxu0 %v68
    %197 = vmatprep.subr.mxu0 0.0
    %198 = vmatpush1.msra.mxu0 %v69
    %199 = vmatprep.subr.mxu0 0.0
    %200 = vmatpush1.msra.mxu0 %v70
    %201 = vmatprep.subr.mxu0 0.0
    %202 = vmatpush1.msra.mxu0 %v71
    %203 = vmatprep.subr.mxu0 0.0
    %204 = vmatpush1.msra.mxu0 %v72
    %205 = vmatprep.subr.mxu0 0.0
    %206 = vmatpush1.msra.mxu0 %v73
    %207 = vmatprep.subr.mxu0 0.0
    %208 = vmatpush1.msra.mxu0 %v74
    %209 = vmatprep.subr.mxu0 0.0
    %210 = vmatpush1.msra.mxu0 %v75
    %211 = vmatprep.subr.mxu0 0.0
    %212 = vmatpush1.msra.mxu0 %v76
    %213 = vmatprep.subr.mxu0 0.0
    %214 = vmatpush1.msra.mxu0 %v77
    %215 = vmatprep.subr.mxu0 0.0
    %216 = vmatpush1.msra.mxu0 0.0
    %217 = vmatprep.subr.mxu0 0.0
    %218 = vmatpush1.msra.mxu0 0.0
    %219 = vmatprep.subr.mxu0 0.0
    %220 = vmatpush1.msra.mxu0 0.0
    %221 = vmatprep.subr.mxu0 0.0
    %222 = vmatpush1.msra.mxu0 0.0
    %223 = vmatprep.subr.mxu0 0.0
    %224 = vmatpush1.msra.mxu0 0.0
    %225 = vmatprep.subr.mxu0 0.0
    %226 = vmatpush1.msra.mxu0 0.0
    %227 = vmatprep.subr.mxu0 0.0
    %228 = vmatpush1.msra.mxu0 0.0
    %229 = vmatprep.subr.mxu0 0.0
    %230 = vmatpush1.msra.mxu0 0.0
    %231 = vmatprep.subr.mxu0 0.0
    %232 = vmatpush1.msra.mxu0 0.0
    %233 = vmatprep.subr.mxu0 0.0
    %234 = vmatpush1.msra.mxu0 0.0
    %235 = vmatprep.subr.mxu0 0.0
    %236 = vmatpush1.msra.mxu0 0.0
    %237 = vmatprep.subr.mxu0 0.0
    %238 = vmatpush1.msra.mxu0 0.0
    %239 = vmatprep.subr.mxu0 0.0
    %240 = vmatpush1.msra.mxu0 0.0
    %241 = vmatprep.subr.mxu0 0.0
    %242 = vmatpush1.msra.mxu0 0.0
    %243 = vmatprep.mubr.f32.mxu0 %v107
    %244 = vmatmul.mubr.f32.gmra.mrb[0].mxu0 %v100
    %v245 = vpop.f32.mrb[0].mxu0
    %v246 = vadd.f32 %v176, %v245
    %v247 = vpop.f32.mrb[0].mxu0
    %248 = vdwg.mxu0
    %v249 = vmax.f32 %v246, 0.0
    %v250 = vld [vmem:[%s3] sm:$0xff]
    %v251 = vld [vmem:[%s3 + $0x8] sm:$0xff]
    %v252 = vld [vmem:[%s3 + $0x10] sm:$0xff]
    %v253 = vld [vmem:[%s3 + $0x18] sm:$0xff]
    %v254 = vld [vmem:[%s3 + $0x20] sm:$0xff]
    %v255 = vld [vmem:[%s3 + $0x28] sm:$0xff]
    %v256 = vld [vmem:[%s3 + $0x30] sm:$0xff]
    %v257 = vld [vmem:[%s3 + $0x38] sm:$0xff]
    %v258 = vld [vmem:[%s3 + $0x40] sm:$0xff]
    %v259 = vld [vmem:[%s3 + $0x48] sm:$0xff]
    %v260 = vld [vmem:[%s3 + $0x50] sm:$0xff]
    %v261 = vld [vmem:[%s3 + $0x58] sm:$0xff]
    %v262 = vld [vmem:[%s3 + $0x60] sm:$0xff]
    %v263 = vld [vmem:[%s3 + $0x68] sm:$0xff]
    %v264 = vld [vmem:[%s3 + $0x70] sm:$0xff]
    %v265 = vld [vmem:[%s4] sm:$0x1]
    %v267 = vlaneseq
    %v268 = vshrl.u32 %v267, 7
    %v269 = vsub.s32 0, %v268
    %v270 = vrot.slane %v265, %v269
    %vm272 = vcmask 982016
    %v274 = vsel %vm272, %v249, 0
    %276 = vmatprep.subr.mxu0 0.0
    %277 = vmatpush1.msra.mxu0 %v250
    %278 = vmatprep.subr.mxu0 0.0
    %279 = vmatpush1.msra.mxu0 %v251
    %280 = vmatprep.subr.mxu0 0.0
    %281 = vmatpush1.msra.mxu0 %v252
    %282 = vmatprep.subr.mxu0 0.0
    %283 = vmatpush1.msra.mxu0 %v253
    %284 = vmatprep.subr.mxu0 0.0
    %285 = vmatpush1.msra.mxu0 %v254
    %286 = vmatprep.subr.mxu0 0.0
    %287 = vmatpush1.msra.mxu0 %v255
    %288 = vmatprep.subr.mxu0 0.0
    %289 = vmatpush1.msra.mxu0 %v256
    %290 = vmatprep.subr.mxu0 0.0
    %291 = vmatpush1.msra.mxu0 %v257
    %292 = vmatprep.subr.mxu0 0.0
    %293 = vmatpush1.msra.mxu0 %v258
    %294 = vmatprep.subr.mxu0 0.0
    %295 = vmatpush1.msra.mxu0 %v259
    %296 = vmatprep.subr.mxu0 0.0
    %297 = vmatpush1.msra.mxu0 %v260
    %298 = vmatprep.subr.mxu0 0.0
    %299 = vmatpush1.msra.mxu0 %v261
    %300 = vmatprep.subr.mxu0 0.0
    %301 = vmatpush1.msra.mxu0 %v262
    %302 = vmatprep.subr.mxu0 0.0
    %303 = vmatpush1.msra.mxu0 %v263
    %304 = vmatprep.subr.mxu0 0.0
    %305 = vmatpush1.msra.mxu0 %v264
    %306 = vmatprep.subr.mxu0 0.0
    %307 = vmatpush1.msra.mxu0 0.0
    %308 = vmatprep.subr.mxu0 0.0
    %309 = vmatpush1.msra.mxu0 0.0
    %310 = vmatprep.subr.mxu0 0.0
    %311 = vmatpush1.msra.mxu0 0.0
    %312 = vmatprep.subr.mxu0 0.0
    %313 = vmatpush1.msra.mxu0 0.0
    %314 = vmatprep.subr.mxu0 0.0
    %315 = vmatpush1.msra.mxu0 0.0
    %316 = vmatprep.subr.mxu0 0.0
    %317 = vmatpush1.msra.mxu0 0.0
    %318 = vmatprep.subr.mxu0 0.0
    %319 = vmatpush1.msra.mxu0 0.0
    %320 = vmatprep.subr.mxu0 0.0
    %321 = vmatpush1.msra.mxu0 0.0
    %322 = vmatprep.subr.mxu0 0.0
    %323 = vmatpush1.msra.mxu0 0.0
    %324 = vmatprep.subr.mxu0 0.0
    %325 = vmatpush1.msra.mxu0 0.0
    %326 = vmatprep.subr.mxu0 0.0
    %327 = vmatpush1.msra.mxu0 0.0
    %328 = vmatprep.subr.mxu0 0.0
    %329 = vmatpush1.msra.mxu0 0.0
    %330 = vmatprep.subr.mxu0 0.0
    %331 = vmatpush1.msra.mxu0 0.0
    %332 = vmatprep.subr.mxu0 0.0
    %333 = vmatpush1.msra.mxu0 0.0
    %334 = vmatprep.subr.mxu0 0.0
    %335 = vmatpush1.msra.mxu0 0.0
    %336 = vmatprep.subr.mxu0 0.0
    %337 = vmatpush1.msra.mxu0 0.0
    %338 = vmatprep.subr.mxu0 0.0
    %339 = vmatpush1.msra.mxu0 0.0
    %340 = vmatprep.mubr.f32.mxu0 0.0
    %341 = vmatmul.mubr.f32.gmra.mrb[0].mxu0 %v274
    %v342 = vpop.f32.mrb[0].mxu0
    %v343 = vadd.f32 %v270, %v342
    %v344 = vpop.f32.mrb[0].mxu0
    %345 = vdwg.mxu0
    %v346 = vmax.f32 %v343, 0.0
    %v347 = vld [vmem:[%s5] sm:$0xff]
    %v348 = vld [vmem:[%s5 + $0x8] sm:$0xff]
    %v349 = vld [vmem:[%s5 + $0x10] sm:$0xff]
    %v350 = vld [vmem:[%s5 + $0x18] sm:$0xff]
    %v351 = vld [vmem:[%s5 + $0x20] sm:$0xff]
    %v352 = vld [vmem:[%s5 + $0x28] sm:$0xff]
    %v353 = vld [vmem:[%s5 + $0x30] sm:$0xff]
    %v354 = vld [vmem:[%s5 + $0x38] sm:$0xff]
    %v355 = vld [vmem:[%s5 + $0x40] sm:$0xff]
    %v356 = vld [vmem:[%s5 + $0x48] sm:$0xff]
    %v357 = vld [vmem:[%s5 + $0x50] sm:$0xf]
    %v358 = vld [vmem:[%s6] sm:$0x1]
    %v360 = vlaneseq
    %v361 = vshrl.u32 %v360, 7
    %v362 = vsub.s32 0, %v361
    %v363 = vrot.slane %v358, %v362
    %vm365 = vcmask 687104
    %v367 = vsel %vm365, %v346, 0
    %vm369 = vcmask 1043456
    %v371 = vsel %vm369, %v357, 0
    %373 = vmatprep.subr.mxu0 0.0
    %374 = vmatpush1.msra.mxu0 %v347
    %375 = vmatprep.subr.mxu0 0.0
    %376 = vmatpush1.msra.mxu0 %v348
    %377 = vmatprep.subr.mxu0 0.0
    %378 = vmatpush1.msra.mxu0 %v349
    %379 = vmatprep.subr.mxu0 0.0
    %380 = vmatpush1.msra.mxu0 %v350
    %381 = vmatprep.subr.mxu0 0.0
    %382 = vmatpush1.msra.mxu0 %v351
    %383 = vmatprep.subr.mxu0 0.0
    %384 = vmatpush1.msra.mxu0 %v352
    %385 = vmatprep.subr.mxu0 0.0
    %386 = vmatpush1.msra.mxu0 %v353
    %387 = vmatprep.subr.mxu0 0.0
    %388 = vmatpush1.msra.mxu0 %v354
    %389 = vmatprep.subr.mxu0 0.0
    %390 = vmatpush1.msra.mxu0 %v355
    %391 = vmatprep.subr.mxu0 0.0
    %392 = vmatpush1.msra.mxu0 %v356
    %393 = vmatprep.subr.mxu0 0.0
    %394 = vmatpush1.msra.mxu0 %v371
    %395 = vmatprep.subr.mxu0 0.0
    %396 = vmatpush1.msra.mxu0 0.0
    %397 = vmatprep.subr.mxu0 0.0
    %398 = vmatpush1.msra.mxu0 0.0
    %399 = vmatprep.subr.mxu0 0.0
    %400 = vmatpush1.msra.mxu0 0.0
    %401 = vmatprep.subr.mxu0 0.0
    %402 = vmatpush1.msra.mxu0 0.0
    %403 = vmatprep.subr.mxu0 0.0
    %404 = vmatpush1.msra.mxu0 0.0
    %405 = vmatprep.subr.mxu0 0.0
    %406 = vmatpush1.msra.mxu0 0.0
    %407 = vmatprep.subr.mxu0 0.0
    %408 = vmatpush1.msra.mxu0 0.0
    %409 = vmatprep.subr.mxu0 0.0
    %410 = vmatpush1.msra.mxu0 0.0
    %411 = vmatprep.subr.mxu0 0.0
    %412 = vmatpush1.msra.mxu0 0.0
    %413 = vmatprep.subr.mxu0 0.0
    %414 = vmatpush1.msra.mxu0 0.0
    %415 = vmatprep.subr.mxu0 0.0
    %416 = vmatpush1.msra.mxu0 0.0
    %417 = vmatprep.subr.mxu0 0.0
    %418 = vmatpush1.msra.mxu0 0.0
    %419 = vmatprep.subr.mxu0 0.0
    %420 = vmatpush1.msra.mxu0 0.0
    %421 = vmatprep.subr.mxu0 0.0
    %422 = vmatpush1.msra.mxu0 0.0
    %423 = vmatprep.subr.mxu0 0.0
    %424 = vmatpush1.msra.mxu0 0.0
    %425 = vmatprep.subr.mxu0 0.0
    %426 = vmatpush1.msra.mxu0 0.0
    %427 = vmatprep.subr.mxu0 0.0
    %428 = vmatpush1.msra.mxu0 0.0
    %429 = vmatprep.subr.mxu0 0.0
    %430 = vmatpush1.msra.mxu0 0.0
    %431 = vmatprep.subr.mxu0 0.0
    %432 = vmatpush1.msra.mxu0 0.0
    %433 = vmatprep.subr.mxu0 0.0
    %434 = vmatpush1.msra.mxu0 0.0
    %435 = vmatprep.subr.mxu0 0.0
    %436 = vmatpush1.msra.mxu0 0.0
    %437 = vmatprep.mubr.f32.mxu0 0.0
    %438 = vmatmul.mubr.f32.gmra.mrb[0].mxu0 %v367
    %v439 = vpop.f32.mrb[0].mxu0
    %v440 = vadd.f32 %v363, %v439
    %v441 = vpop.f32.mrb[0].mxu0
    %442 = vdwg.mxu0
    %vm443 = vcmask 74752
    %444 = vst.msk [vmem:[#allocation2] sm:$0x3] %vm443, %v440
    // Predicated region
    $region30: #{lenet_forward.5} parent=1 // pred_check
      _
    $region31: #{lenet_forward.5} parent=1 // pred_check_branch
      %446 = sbr.rel (0) target = $region33
    $region32: #{lenet_forward.5} parent=1 // pred_region
      %s448 = ssub.s32 32, 32
      %449 = vsyncadd [#allocation3], %s448
      %s451 = sshll.u32 [#allocation2], 4
      %s452 = int_to_ptr.vmem [resolvable:$true] %s451
      %454 = dma.vmem_to_hbm [thread:$0]  %s452, 32, %s7, [#allocation3]
    $region33: #{lenet_forward.5} parent=1 // pred_fallthru
      _
    // Predicated region
    $region34: #{lenet_forward.5} parent=1 // pred_check
      _
    $region35: #{lenet_forward.5} parent=1 // pred_check_branch
      %456 = sbr.rel (0) target = $region37
    $region36: #{lenet_forward.5} parent=1 // pred_region
      %457 = dma.done [#allocation3], 32
    $region37: #{lenet_forward.5} parent=1 // pred_fallthru
      _
    %458 = vsyncpa [#allocation3], 1

// kernel: lenet_forward.3
$region0: #{lenet_forward.3}
  #allocation0 [shape = 'u32[]', space=smem, size = 0x4, offset = 0x4, fixed_abs, tag = 'smem constant byte address 0x4 - core index']
  #allocation1 [shape = 'u32[144,128]{1,0:T(1,128)}', space=vmem, size = 0x12000, scoped, tag = 'internal scratch']
  %s0 = inlined_call_operand.vmem [shape: f32[28,160], index: 0, kind: input, shape index: {}]
  %s1 = inlined_call_operand.vmem [shape: f32[28,160], index: 1, kind: input, shape index: {}]
  %s2 = inlined_call_operand.vmem [shape: f32[160,84], index: 2, kind: input, shape index: {}]
  %s3 = inlined_call_operand.vmem [shape: f32[160,84], index: 3, kind: input, shape index: {}]
  %s4 = inlined_call_operand.vmem [shape: f32[1,84], index: 4, kind: input, shape index: {}]
  %s5 = inlined_call_operand.vmem [shape: f32[28,84], index: 5, kind: output, shape index: {}]
  %s6 = sld [smem:[#allocation0]]
  $region30: #{lenet_forward.3} parent=0
    _
  %s8 = ssub.s32 1, %s6
  %s9 = scalar_select 0, %s8, %s6
  // Predicated region
  $region2: #{lenet_forward.3} parent=0 // pred_check
    _
  $region3: #{lenet_forward.3} parent=0 // pred_check_branch
    %11 = sbr.rel (0) target = $region5
  $region4: #{lenet_forward.3} parent=0 // pred_region
    _
  $region5: #{lenet_forward.3} parent=0 // pred_fallthru
    _
  // Predicated region
  $region6: #{lenet_forward.3} parent=0 // pred_check
    _
  $region7: #{lenet_forward.3} parent=0 // pred_check_branch
    %13 = sbr.rel (0) target = $region9
  $region8: #{lenet_forward.3} parent=0 // pred_region
    _
  $region9: #{lenet_forward.3} parent=0 // pred_fallthru
    _
  // Predicated region
  $region10: #{lenet_forward.3} parent=0 // pred_check
    _
  $region11: #{lenet_forward.3} parent=0 // pred_check_branch
    %15 = sbr.rel (0) target = $region13
  $region12: #{lenet_forward.3} parent=0 // pred_region
    _
  $region13: #{lenet_forward.3} parent=0 // pred_fallthru
    _
  // Predicated region
  $region14: #{lenet_forward.3} parent=0 // pred_check
    _
  $region15: #{lenet_forward.3} parent=0 // pred_check_branch
    %17 = sbr.rel (0) target = $region17
  $region16: #{lenet_forward.3} parent=0 // pred_region
    _
  $region17: #{lenet_forward.3} parent=0 // pred_fallthru
    _
  // Predicated region
  $region18: #{lenet_forward.3} parent=0 // pred_check
    _
  $region19: #{lenet_forward.3} parent=0 // pred_check_branch
    %19 = sbr.rel (0) target = $region21
  $region20: #{lenet_forward.3} parent=0 // pred_region
    _
  $region21: #{lenet_forward.3} parent=0 // pred_fallthru
    _
  %v20 = vld [vmem:[%s0] sm:$0xff]
  %v21 = vld [vmem:[%s0 + $0x8] sm:$0xff]
  %v22 = vld [vmem:[%s0 + $0x10] sm:$0xff]
  %v23 = vld [vmem:[%s0 + $0x18] sm:$0xff]
  %v24 = vld [vmem:[%s0 + $0x20] sm:$0xff]
  %v25 = vld [vmem:[%s0 + $0x28] sm:$0xff]
  %v26 = vld [vmem:[%s0 + $0x30] sm:$0xf]
  %v27 = vld [vmem:[%s0 + $0x38] sm:$0xf]
  %v28 = vld [vmem:[%s1] sm:$0xff]
  %v29 = vld [vmem:[%s1 + $0x8] sm:$0xff]
  %v30 = vld [vmem:[%s1 + $0x10] sm:$0xff]
  %v31 = vld [vmem:[%s1 + $0x18] sm:$0xff]
  %v32 = vld [vmem:[%s1 + $0x20] sm:$0xff]
  %v33 = vld [vmem:[%s1 + $0x28] sm:$0xff]
  %v34 = vld [vmem:[%s1 + $0x30] sm:$0xf]
  %v35 = vld [vmem:[%s1 + $0x38] sm:$0xf]
  %v36 = vld [vmem:[%s2] sm:$0xff]
  %v37 = vld [vmem:[%s2 + $0x8] sm:$0xff]
  %v38 = vld [vmem:[%s2 + $0x10] sm:$0xff]
  %v39 = vld [vmem:[%s2 + $0x18] sm:$0xff]
  %v40 = vld [vmem:[%s2 + $0x20] sm:$0xff]
  %v41 = vld [vmem:[%s2 + $0x28] sm:$0xff]
  %v42 = vld [vmem:[%s2 + $0x30] sm:$0xff]
  %v43 = vld [vmem:[%s2 + $0x38] sm:$0xff]
  %v44 = vld [vmem:[%s2 + $0x40] sm:$0xff]
  %v45 = vld [vmem:[%s2 + $0x48] sm:$0xff]
  %v46 = vld [vmem:[%s2 + $0x50] sm:$0xff]
  %v47 = vld [vmem:[%s2 + $0x58] sm:$0xff]
  %v48 = vld [vmem:[%s2 + $0x60] sm:$0xff]
  %v49 = vld [vmem:[%s2 + $0x68] sm:$0xff]
  %v50 = vld [vmem:[%s2 + $0x70] sm:$0xff]
  %v51 = vld [vmem:[%s2 + $0x78] sm:$0xff]
  %v52 = vld [vmem:[%s2 + $0x80] sm:$0xff]
  %v53 = vld [vmem:[%s2 + $0x88] sm:$0xff]
  %v54 = vld [vmem:[%s2 + $0x90] sm:$0xff]
  %v55 = vld [vmem:[%s2 + $0x98] sm:$0xff]
  %v56 = vld [vmem:[%s3] sm:$0xff]
  %v57 = vld [vmem:[%s3 + $0x8] sm:$0xff]
  %v58 = vld [vmem:[%s3 + $0x10] sm:$0xff]
  %v59 = vld [vmem:[%s3 + $0x18] sm:$0xff]
  %v60 = vld [vmem:[%s3 + $0x20] sm:$0xff]
  %v61 = vld [vmem:[%s3 + $0x28] sm:$0xff]
  %v62 = vld [vmem:[%s3 + $0x30] sm:$0xff]
  %v63 = vld [vmem:[%s3 + $0x38] sm:$0xff]
  %v64 = vld [vmem:[%s3 + $0x40] sm:$0xff]
  %v65 = vld [vmem:[%s3 + $0x48] sm:$0xff]
  %v66 = vld [vmem:[%s3 + $0x50] sm:$0xff]
  %v67 = vld [vmem:[%s3 + $0x58] sm:$0xff]
  %v68 = vld [vmem:[%s3 + $0x60] sm:$0xff]
  %v69 = vld [vmem:[%s3 + $0x68] sm:$0xff]
  %v70 = vld [vmem:[%s3 + $0x70] sm:$0xff]
  %v71 = vld [vmem:[%s3 + $0x78] sm:$0xff]
  %v72 = vld [vmem:[%s3 + $0x80] sm:$0xff]
  %v73 = vld [vmem:[%s3 + $0x88] sm:$0xff]
  %v74 = vld [vmem:[%s3 + $0x90] sm:$0xff]
  %v75 = vld [vmem:[%s3 + $0x98] sm:$0xff]
  %vm76 = vcmask 261120
  %v78 = vsel %vm76, %v21, 0
  %v81 = vsel %vm76, %v23, 0
  %v84 = vsel %vm76, %v25, 0
  %v87 = vsel %vm76, %v27, 0
  %89 = vmatprep.subr.mxu0 0.0
  %90 = vmatpush1.msra.mxu0 %v36
  %91 = vmatprep.subr.mxu0 0.0
  %92 = vmatpush1.msra.mxu0 %v37
  %93 = vmatprep.subr.mxu0 0.0
  %94 = vmatpush1.msra.mxu0 %v38
  %95 = vmatprep.subr.mxu0 0.0
  %96 = vmatpush1.msra.mxu0 %v39
  %97 = vmatprep.subr.mxu0 0.0
  %98 = vmatpush1.msra.mxu0 %v40
  %99 = vmatprep.subr.mxu0 0.0
  %100 = vmatpush1.msra.mxu0 %v41
  %101 = vmatprep.subr.mxu0 0.0
  %102 = vmatpush1.msra.mxu0 %v42
  %103 = vmatprep.subr.mxu0 0.0
  %104 = vmatpush1.msra.mxu0 %v43
  %105 = vmatprep.subr.mxu0 0.0
  %106 = vmatpush1.msra.mxu0 %v44
  %107 = vmatprep.subr.mxu0 0.0
  %108 = vmatpush1.msra.mxu0 %v45
  %109 = vmatprep.subr.mxu0 0.0
  %110 = vmatpush1.msra.mxu0 %v46
  %111 = vmatprep.subr.mxu0 0.0
  %112 = vmatpush1.msra.mxu0 %v47
  %113 = vmatprep.subr.mxu0 0.0
  %114 = vmatpush1.msra.mxu0 %v48
  %115 = vmatprep.subr.mxu0 0.0
  %116 = vmatpush1.msra.mxu0 %v49
  %117 = vmatprep.subr.mxu0 0.0
  %118 = vmatpush1.msra.mxu0 %v50
  %119 = vmatprep.subr.mxu0 0.0
  %120 = vmatpush1.msra.mxu0 %v51
  %121 = vmatprep.subr.mxu0 0.0
  %122 = vmatpush1.msra.mxu0 %v52
  %123 = vmatprep.subr.mxu0 0.0
  %124 = vmatpush1.msra.mxu0 %v53
  %125 = vmatprep.subr.mxu0 0.0
  %126 = vmatpush1.msra.mxu0 %v54
  %127 = vmatprep.subr.mxu0 0.0
  %128 = vmatpush1.msra.mxu0 %v55
  %129 = vmatprep.subr.mxu0 0.0
  %130 = vmatpush1.msra.mxu0 0.0
  %131 = vmatprep.subr.mxu0 0.0
  %132 = vmatpush1.msra.mxu0 0.0
  %133 = vmatprep.subr.mxu0 0.0
  %134 = vmatpush1.msra.mxu0 0.0
  %135 = vmatprep.subr.mxu0 0.0
  %136 = vmatpush1.msra.mxu0 0.0
  %137 = vmatprep.subr.mxu0 0.0
  %138 = vmatpush1.msra.mxu0 0.0
  %139 = vmatprep.subr.mxu0 0.0
  %140 = vmatpush1.msra.mxu0 0.0
  %141 = vmatprep.subr.mxu0 0.0
  %142 = vmatpush1.msra.mxu0 0.0
  %143 = vmatprep.subr.mxu0 0.0
  %144 = vmatpush1.msra.mxu0 0.0
  %145 = vmatprep.subr.mxu0 0.0
  %146 = vmatpush1.msra.mxu0 0.0
  %147 = vmatprep.subr.mxu0 0.0
  %148 = vmatpush1.msra.mxu0 0.0
  %149 = vmatprep.subr.mxu0 0.0
  %150 = vmatpush1.msra.mxu0 0.0
  %151 = vmatprep.subr.mxu0 0.0
  %152 = vmatpush1.msra.mxu0 0.0
  %153 = vmatprep.mubr.f32.mxu0 %v78
  %154 = vmatmul.mubr.f32.gmra.mrb[0].mxu0 %v20
  %v155 = vpop.f32.mrb[0].mxu0
  %v156 = vadd.f32 0.0, %v155
  %v157 = vpop.f32.mrb[0].mxu0
  %158 = vmatprep.mubr.f32.mxu0 %v81
  %159 = vmatmul.mubr.f32.gmra.mrb[0].mxu0 %v22
  %v160 = vpop.f32.mrb[0].mxu0
  %v161 = vadd.f32 0.0, %v160
  %v162 = vpop.f32.mrb[0].mxu0
  %163 = vmatprep.mubr.f32.mxu0 %v84
  %164 = vmatmul.mubr.f32.gmra.mrb[0].mxu0 %v24
  %v165 = vpop.f32.mrb[0].mxu0
  %v166 = vadd.f32 0.0, %v165
  %v167 = vpop.f32.mrb[0].mxu0
  %168 = vmatprep.mubr.f32.mxu0 %v87
  %169 = vmatmul.mubr.f32.gmra.mrb[0].mxu0 %v26
  %v170 = vpop.f32.mrb[0].mxu0
  %v171 = vadd.f32 0.0, %v170
  %v172 = vpop.f32.mrb[0].mxu0
  %173 = vdwg.mxu0
  %174 = vmatprep.subr.mxu0 0.0
  %175 = vmatpush1.msra.mxu0 %v56
  %176 = vmatprep.subr.mxu0 0.0
  %177 = vmatpush1.msra.mxu0 %v57
  %178 = vmatprep.subr.mxu0 0.0
  %179 = vmatpush1.msra.mxu0 %v58
  %180 = vmatprep.subr.mxu0 0.0
  %181 = vmatpush1.msra.mxu0 %v59
  %182 = vmatprep.subr.mxu0 0.0
  %183 = vmatpush1.msra.mxu0 %v60
  %184 = vmatprep.subr.mxu0 0.0
  %185 = vmatpush1.msra.mxu0 %v61
  %186 = vmatprep.subr.mxu0 0.0
  %187 = vmatpush1.msra.mxu0 %v62
  %188 = vmatprep.subr.mxu0 0.0
  %189 = vmatpush1.msra.mxu0 %v63
  %190 = vmatprep.subr.mxu0 0.0
  %191 = vmatpush1.msra.mxu0 %v64
  %192 = vmatprep.subr.mxu0 0.0
  %193 = vmatpush1.msra.mxu0 %v65
  %194 = vmatprep.subr.mxu0 0.0
  %195 = vmatpush1.msra.mxu0 %v66
  %196 = vmatprep.subr.mxu0 0.0
  %197 = vmatpush1.msra.mxu0 %v67
  %198 = vmatprep.subr.mxu0 0.0
  %199 = vmatpush1.msra.mxu0 %v68
  %200 = vmatprep.subr.mxu0 0.0
  %201 = vmatpush1.msra.mxu0 %v69
  %202 = vmatprep.subr.mxu0 0.0
  %203 = vmatpush1.msra.mxu0 %v70
  %204 = vmatprep.subr.mxu0 0.0
  %205 = vmatpush1.msra.mxu0 %v71
  %206 = vmatprep.subr.mxu0 0.0
  %207 = vmatpush1.msra.mxu0 %v72
  %208 = vmatprep.subr.mxu0 0.0
  %209 = vmatpush1.msra.mxu0 %v73
  %210 = vmatprep.subr.mxu0 0.0
  %211 = vmatpush1.msra.mxu0 %v74
  %212 = vmatprep.subr.mxu0 0.0
  %213 = vmatpush1.msra.mxu0 %v75
  %214 = vmatprep.subr.mxu0 0.0
  %215 = vmatpush1.msra.mxu0 0.0
  %216 = vmatprep.subr.mxu0 0.0
  %217 = vmatpush1.msra.mxu0 0.0
  %218 = vmatprep.subr.mxu0 0.0
  %219 = vmatpush1.msra.mxu0 0.0
  %220 = vmatprep.subr.mxu0 0.0
  %221 = vmatpush1.msra.mxu0 0.0
  %222 = vmatprep.subr.mxu0 0.0
  %223 = vmatpush1.msra.mxu0 0.0
  %224 = vmatprep.subr.mxu0 0.0
  %225 = vmatpush1.msra.mxu0 0.0
  %226 = vmatprep.subr.mxu0 0.0
  %227 = vmatpush1.msra.mxu0 0.0
  %228 = vmatprep.subr.mxu0 0.0
  %229 = vmatpush1.msra.mxu0 0.0
  %230 = vmatprep.subr.mxu0 0.0
  %231 = vmatpush1.msra.mxu0 0.0
  %232 = vmatprep.subr.mxu0 0.0
  %233 = vmatpush1.msra.mxu0 0.0
  %234 = vmatprep.subr.mxu0 0.0
  %235 = vmatpush1.msra.mxu0 0.0
  %236 = vmatprep.subr.mxu0 0.0
  %237 = vmatpush1.msra.mxu0 0.0
  %238 = vmatprep.mubr.f32.mxu0 %v78
  %239 = vmatmul.mubr.f32.gmra.mrb[0].mxu0 %v20
  %v240 = vpop.f32.mrb[0].mxu0
  %v241 = vadd.f32 0.0, %v240
  %v242 = vpop.f32.mrb[0].mxu0
  %243 = vmatprep.mubr.f32.mxu0 %v81
  %244 = vmatmul.mubr.f32.gmra.mrb[0].mxu0 %v22
  %v245 = vpop.f32.mrb[0].mxu0
  %v246 = vadd.f32 0.0, %v245
  %v247 = vpop.f32.mrb[0].mxu0
  %248 = vmatprep.mubr.f32.mxu0 %v84
  %249 = vmatmul.mubr.f32.gmra.mrb[0].mxu0 %v24
  %v250 = vpop.f32.mrb[0].mxu0
  %v251 = vadd.f32 0.0, %v250
  %v252 = vpop.f32.mrb[0].mxu0
  %253 = vmatprep.mubr.f32.mxu0 %v87
  %254 = vmatmul.mubr.f32.gmra.mrb[0].mxu0 %v26
  %v255 = vpop.f32.mrb[0].mxu0
  %v256 = vadd.f32 0.0, %v255
  %v257 = vpop.f32.mrb[0].mxu0
  %258 = vdwg.mxu0
  %v259 = vmax.f32 %v156, %v241
  %v260 = vmax.f32 %v161, %v246
  %v261 = vmax.f32 %v166, %v251
  %v262 = vmax.f32 %v171, %v256
  %v264 = vsel %vm76, %v29, 0
  %v267 = vsel %vm76, %v31, 0
  %v270 = vsel %vm76, %v33, 0
  %v273 = vsel %vm76, %v35, 0
  %275 = vmatprep.subr.mxu0 0.0
  %276 = vmatpush1.msra.mxu0 %v36
  %277 = vmatprep.subr.mxu0 0.0
  %278 = vmatpush1.msra.mxu0 %v37
  %279 = vmatprep.subr.mxu0 0.0
  %280 = vmatpush1.msra.mxu0 %v38
  %281 = vmatprep.subr.mxu0 0.0
  %282 = vmatpush1.msra.mxu0 %v39
  %283 = vmatprep.subr.mxu0 0.0
  %284 = vmatpush1.msra.mxu0 %v40
  %285 = vmatprep.subr.mxu0 0.0
  %286 = vmatpush1.msra.mxu0 %v41
  %287 = vmatprep.subr.mxu0 0.0
  %288 = vmatpush1.msra.mxu0 %v42
  %289 = vmatprep.subr.mxu0 0.0
  %290 = vmatpush1.msra.mxu0 %v43
  %291 = vmatprep.subr.mxu0 0.0
  %292 = vmatpush1.msra.mxu0 %v44
  %293 = vmatprep.subr.mxu0 0.0
  %294 = vmatpush1.msra.mxu0 %v45
  %295 = vmatprep.subr.mxu0 0.0
  %296 = vmatpush1.msra.mxu0 %v46
  %297 = vmatprep.subr.mxu0 0.0
  %298 = vmatpush1.msra.mxu0 %v47
  %299 = vmatprep.subr.mxu0 0.0
  %300 = vmatpush1.msra.mxu0 %v48
  %301 = vmatprep.subr.mxu0 0.0
  %302 = vmatpush1.msra.mxu0 %v49
  %303 = vmatprep.subr.mxu0 0.0
  %304 = vmatpush1.msra.mxu0 %v50
  %305 = vmatprep.subr.mxu0 0.0
  %306 = vmatpush1.msra.mxu0 %v51
  %307 = vmatprep.subr.mxu0 0.0
  %308 = vmatpush1.msra.mxu0 %v52
  %309 = vmatprep.subr.mxu0 0.0
  %310 = vmatpush1.msra.mxu0 %v53
  %311 = vmatprep.subr.mxu0 0.0
  %312 = vmatpush1.msra.mxu0 %v54
  %313 = vmatprep.subr.mxu0 0.0
  %314 = vmatpush1.msra.mxu0 %v55
  %315 = vmatprep.subr.mxu0 0.0
  %316 = vmatpush1.msra.mxu0 0.0
  %317 = vmatprep.subr.mxu0 0.0
  %318 = vmatpush1.msra.mxu0 0.0
  %319 = vmatprep.subr.mxu0 0.0
  %320 = vmatpush1.msra.mxu0 0.0
  %321 = vmatprep.subr.mxu0 0.0
  %322 = vmatpush1.msra.mxu0 0.0
  %323 = vmatprep.subr.mxu0 0.0
  %324 = vmatpush1.msra.mxu0 0.0
  %325 = vmatprep.subr.mxu0 0.0
  %326 = vmatpush1.msra.mxu0 0.0
  %327 = vmatprep.subr.mxu0 0.0
  %328 = vmatpush1.msra.mxu0 0.0
  %329 = vmatprep.subr.mxu0 0.0
  %330 = vmatpush1.msra.mxu0 0.0
  %331 = vmatprep.subr.mxu0 0.0
  %332 = vmatpush1.msra.mxu0 0.0
  %333 = vmatprep.subr.mxu0 0.0
  %334 = vmatpush1.msra.mxu0 0.0
  %335 = vmatprep.subr.mxu0 0.0
  %336 = vmatpush1.msra.mxu0 0.0
  %337 = vmatprep.subr.mxu0 0.0
  %338 = vmatpush1.msra.mxu0 0.0
  %339 = vmatprep.mubr.f32.mxu0 %v264
  %340 = vmatmul.mubr.f32.gmra.mrb[0].mxu0 %v28
  %v341 = vpop.f32.mrb[0].mxu0
  %v342 = vadd.f32 0.0, %v341
  %v343 = vpop.f32.mrb[0].mxu0
  %344 = vmatprep.mubr.f32.mxu0 %v267
  %345 = vmatmul.mubr.f32.gmra.mrb[0].mxu0 %v30
  %v346 = vpop.f32.mrb[0].mxu0
  %v347 = vadd.f32 0.0, %v346
  %v348 = vpop.f32.mrb[0].mxu0
  %349 = vmatprep.mubr.f32.mxu0 %v270
  %350 = vmatmul.mubr.f32.gmra.mrb[0].mxu0 %v32
  %v351 = vpop.f32.mrb[0].mxu0
  %v352 = vadd.f32 0.0, %v351
  %v353 = vpop.f32.mrb[0].mxu0
  %354 = vmatprep.mubr.f32.mxu0 %v273
  %355 = vmatmul.mubr.f32.gmra.mrb[0].mxu0 %v34
  %v356 = vpop.f32.mrb[0].mxu0
  %v357 = vadd.f32 0.0, %v356
  %v358 = vpop.f32.mrb[0].mxu0
  %359 = vdwg.mxu0
  %360 = vmatprep.subr.mxu0 0.0
  %361 = vmatpush1.msra.mxu0 %v56
  %362 = vmatprep.subr.mxu0 0.0
  %363 = vmatpush1.msra.mxu0 %v57
  %364 = vmatprep.subr.mxu0 0.0
  %365 = vmatpush1.msra.mxu0 %v58
  %366 = vmatprep.subr.mxu0 0.0
  %367 = vmatpush1.msra.mxu0 %v59
  %368 = vmatprep.subr.mxu0 0.0
  %369 = vmatpush1.msra.mxu0 %v60
  %370 = vmatprep.subr.mxu0 0.0
  %371 = vmatpush1.msra.mxu0 %v61
  %372 = vmatprep.subr.mxu0 0.0
  %373 = vmatpush1.msra.mxu0 %v62
  %374 = vmatprep.subr.mxu0 0.0
  %375 = vmatpush1.msra.mxu0 %v63
  %376 = vmatprep.subr.mxu0 0.0
  %377 = vmatpush1.msra.mxu0 %v64
  %378 = vmatprep.subr.mxu0 0.0
  %379 = vmatpush1.msra.mxu0 %v65
  %380 = vmatprep.subr.mxu0 0.0
  %381 = vmatpush1.msra.mxu0 %v66
  %382 = vmatprep.subr.mxu0 0.0
  %383 = vmatpush1.msra.mxu0 %v67
  %384 = vmatprep.subr.mxu0 0.0
  %385 = vmatpush1.msra.mxu0 %v68
  %386 = vmatprep.subr.mxu0 0.0
  %387 = vmatpush1.msra.mxu0 %v69
  %388 = vmatprep.subr.mxu0 0.0
  %389 = vmatpush1.msra.mxu0 %v70
  %390 = vmatprep.subr.mxu0 0.0
  %391 = vmatpush1.msra.mxu0 %v71
  %392 = vmatprep.subr.mxu0 0.0
  %393 = vmatpush1.msra.mxu0 %v72
  %394 = vmatprep.subr.mxu0 0.0
  %395 = vmatpush1.msra.mxu0 %v73
  %396 = vmatprep.subr.mxu0 0.0
  %397 = vmatpush1.msra.mxu0 %v74
  %398 = vmatprep.subr.mxu0 0.0
  %399 = vmatpush1.msra.mxu0 %v75
  %400 = vmatprep.subr.mxu0 0.0
  %401 = vmatpush1.msra.mxu0 0.0
  %402 = vmatprep.subr.mxu0 0.0
  %403 = vmatpush1.msra.mxu0 0.0
  %404 = vmatprep.subr.mxu0 0.0
  %405 = vmatpush1.msra.mxu0 0.0
  %406 = vmatprep.subr.mxu0 0.0
  %407 = vmatpush1.msra.mxu0 0.0
  %408 = vmatprep.subr.mxu0 0.0
  %409 = vmatpush1.msra.mxu0 0.0
  %410 = vmatprep.subr.mxu0 0.0
  %411 = vmatpush1.msra.mxu0 0.0
  %412 = vmatprep.subr.mxu0 0.0
  %413 = vmatpush1.msra.mxu0 0.0
  %414 = vmatprep.subr.mxu0 0.0
  %415 = vmatpush1.msra.mxu0 0.0
  %416 = vmatprep.subr.mxu0 0.0
  %417 = vmatpush1.msra.mxu0 0.0
  %418 = vmatprep.subr.mxu0 0.0
  %419 = vmatpush1.msra.mxu0 0.0
  %420 = vmatprep.subr.mxu0 0.0
  %421 = vmatpush1.msra.mxu0 0.0
  %422 = vmatprep.subr.mxu0 0.0
  %423 = vmatpush1.msra.mxu0 0.0
  %424 = vmatprep.mubr.f32.mxu0 %v264
  %425 = vmatmul.mubr.f32.gmra.mrb[0].mxu0 %v28
  %v426 = vpop.f32.mrb[0].mxu0
  %v427 = vadd.f32 0.0, %v426
  %v428 = vpop.f32.mrb[0].mxu0
  %429 = vmatprep.mubr.f32.mxu0 %v267
  %430 = vmatmul.mubr.f32.gmra.mrb[0].mxu0 %v30
  %v431 = vpop.f32.mrb[0].mxu0
  %v432 = vadd.f32 0.0, %v431
  %v433 = vpop.f32.mrb[0].mxu0
  %434 = vmatprep.mubr.f32.mxu0 %v270
  %435 = vmatmul.mubr.f32.gmra.mrb[0].mxu0 %v32
  %v436 = vpop.f32.mrb[0].mxu0
  %v437 = vadd.f32 0.0, %v436
  %v438 = vpop.f32.mrb[0].mxu0
  %439 = vmatprep.mubr.f32.mxu0 %v273
  %440 = vmatmul.mubr.f32.gmra.mrb[0].mxu0 %v34
  %v441 = vpop.f32.mrb[0].mxu0
  %v442 = vadd.f32 0.0, %v441
  %v443 = vpop.f32.mrb[0].mxu0
  %444 = vdwg.mxu0
  %v445 = vmax.f32 %v342, %v427
  %v446 = vmax.f32 %v347, %v432
  %v447 = vmax.f32 %v352, %v437
  %v448 = vmax.f32 %v357, %v442
  %v449 = vmax.f32 %v259, %v445
  %v450 = vmax.f32 %v260, %v446
  %v451 = vmax.f32 %v261, %v447
  %v452 = vmax.f32 %v262, %v448
  %v453 = vld [vmem:[%s4] sm:$0x1]
  %v455 = vlaneseq
  %v456 = vshrl.u32 %v455, 7
  %v457 = vsub.s32 0, %v456
  %v458 = vrot.slane %v453, %v457
  %v460 = vadd.f32 %v449, %v458
  %v461 = vadd.f32 %v450, %v458
  %v462 = vadd.f32 %v451, %v458
  %v463 = vadd.f32 %v452, %v458
  %v464 = vmax.f32 %v460, 0.0
  %v465 = vmax.f32 %v461, 0.0
  %v466 = vmax.f32 %v462, 0.0
  %v467 = vmax.f32 %v463, 0.0
  %vm468 = vcmask 687104
  %469 = vst.msk [vmem:[%s5] sm:$0xff] %vm468, %v464
  %470 = vst.msk [vmem:[%s5 + $0x8] sm:$0xff] %vm468, %v465
  %471 = vst.msk [vmem:[%s5 + $0x10] sm:$0xff] %vm468, %v466
  %vm472 = vcmask 683008
  %473 = vst.msk [vmem:[%s5 + $0x18] sm:$0xf] %vm472, %v467
  // Predicated region
  $region22: #{lenet_forward.3} parent=0 // pred_check
    _
  $region23: #{lenet_forward.3} parent=0 // pred_check_branch
    %475 = sbr.rel (0) target = $region25
  $region24: #{lenet_forward.3} parent=0 // pred_region
    _
  $region25: #{lenet_forward.3} parent=0 // pred_fallthru
    _
  // Predicated region
  $region26: #{lenet_forward.3} parent=0 // pred_check
    _
  $region27: #{lenet_forward.3} parent=0 // pred_check_branch
    %477 = sbr.rel (0) target = $region29
  $region28: #{lenet_forward.3} parent=0 // pred_region
    _
  $region29: #{lenet_forward.3} parent=0 // pred_fallthru
    _

// kernel: lenet_forward.4
$region0: #{lenet_forward.4}
  #allocation0 [shape = 'u32[]', space=smem, size = 0x4, offset = 0x4, fixed_abs, tag = 'smem constant byte address 0x4 - core index']
  #allocation1 [shape = 'u32[144,128]{1,0:T(1,128)}', space=vmem, size = 0x12000, scoped, tag = 'internal scratch']
  %s0 = inlined_call_operand.vmem [shape: f32[10,420], index: 0, kind: input, shape index: {}]
  %s1 = inlined_call_operand.vmem [shape: f32[10,420], index: 1, kind: input, shape index: {}]
  %s2 = inlined_call_operand.vmem [shape: f32[420,80], index: 2, kind: input, shape index: {}]
  %s3 = inlined_call_operand.vmem [shape: f32[420,80], index: 3, kind: input, shape index: {}]
  %s4 = inlined_call_operand.vmem [shape: f32[1,80], index: 4, kind: input, shape index: {}]
  %s5 = inlined_call_operand.vmem [shape: f32[10,80], index: 5, kind: output, shape index: {}]
  %s6 = sld [smem:[#allocation0]]
  $region30: #{lenet_forward.4} parent=0
    _
  %s8 = ssub.s32 1, %s6
  %s9 = scalar_select 0, %s8, %s6
  // Predicated region
  $region2: #{lenet_forward.4} parent=0 // pred_check
    _
  $region3: #{lenet_forward.4} parent=0 // pred_check_branch
    %11 = sbr.rel (0) target = $region5
  $region4: #{lenet_forward.4} parent=0 // pred_region
    _
  $region5: #{lenet_forward.4} parent=0 // pred_fallthru
    _
  // Predicated region
  $region6: #{lenet_forward.4} parent=0 // pred_check
    _
  $region7: #{lenet_forward.4} parent=0 // pred_check_branch
    %13 = sbr.rel (0) target = $region9
  $region8: #{lenet_forward.4} parent=0 // pred_region
    _
  $region9: #{lenet_forward.4} parent=0 // pred_fallthru
    _
  // Predicated region
  $region10: #{lenet_forward.4} parent=0 // pred_check
    _
  $region11: #{lenet_forward.4} parent=0 // pred_check_branch
    %15 = sbr.rel (0) target = $region13
  $region12: #{lenet_forward.4} parent=0 // pred_region
    _
  $region13: #{lenet_forward.4} parent=0 // pred_fallthru
    _
  // Predicated region
  $region14: #{lenet_forward.4} parent=0 // pred_check
    _
  $region15: #{lenet_forward.4} parent=0 // pred_check_branch
    %17 = sbr.rel (0) target = $region17
  $region16: #{lenet_forward.4} parent=0 // pred_region
    _
  $region17: #{lenet_forward.4} parent=0 // pred_fallthru
    _
  // Predicated region
  $region18: #{lenet_forward.4} parent=0 // pred_check
    _
  $region19: #{lenet_forward.4} parent=0 // pred_check_branch
    %19 = sbr.rel (0) target = $region21
  $region20: #{lenet_forward.4} parent=0 // pred_region
    _
  $region21: #{lenet_forward.4} parent=0 // pred_fallthru
    _
  %v20 = vld [vmem:[%s0] sm:$0xff]
  %v21 = vld [vmem:[%s0 + $0x8] sm:$0xff]
  %v22 = vld [vmem:[%s0 + $0x10] sm:$0xff]
  %v23 = vld [vmem:[%s0 + $0x18] sm:$0xff]
  %v24 = vld [vmem:[%s0 + $0x20] sm:$0x3]
  %v25 = vld [vmem:[%s0 + $0x28] sm:$0x3]
  %v26 = vld [vmem:[%s0 + $0x30] sm:$0x3]
  %v27 = vld [vmem:[%s0 + $0x38] sm:$0x3]
  %v28 = vld [vmem:[%s1] sm:$0xff]
  %v29 = vld [vmem:[%s1 + $0x8] sm:$0xff]
  %v30 = vld [vmem:[%s1 + $0x10] sm:$0xff]
  %v31 = vld [vmem:[%s1 + $0x18] sm:$0xff]
  %v32 = vld [vmem:[%s1 + $0x20] sm:$0x3]
  %v33 = vld [vmem:[%s1 + $0x28] sm:$0x3]
  %v34 = vld [vmem:[%s1 + $0x30] sm:$0x3]
  %v35 = vld [vmem:[%s1 + $0x38] sm:$0x3]
  %v36 = vld [vmem:[%s2] sm:$0xff]
  %v37 = vld [vmem:[%s2 + $0x8] sm:$0xff]
  %v38 = vld [vmem:[%s2 + $0x10] sm:$0xff]
  %v39 = vld [vmem:[%s2 + $0x18] sm:$0xff]
  %v40 = vld [vmem:[%s2 + $0x20] sm:$0xff]
  %v41 = vld [vmem:[%s2 + $0x28] sm:$0xff]
  %v42 = vld [vmem:[%s2 + $0x30] sm:$0xff]
  %v43 = vld [vmem:[%s2 + $0x38] sm:$0xff]
  %v44 = vld [vmem:[%s2 + $0x40] sm:$0xff]
  %v45 = vld [vmem:[%s2 + $0x48] sm:$0xff]
  %v46 = vld [vmem:[%s2 + $0x50] sm:$0xff]
  %v47 = vld [vmem:[%s2 + $0x58] sm:$0xff]
  %v48 = vld [vmem:[%s2 + $0x60] sm:$0xff]
  %v49 = vld [vmem:[%s2 + $0x68] sm:$0xff]
  %v50 = vld [vmem:[%s2 + $0x70] sm:$0xff]
  %v51 = vld [vmem:[%s2 + $0x78] sm:$0xff]
  %v52 = vld [vmem:[%s2 + $0x80] sm:$0xff]
  %v53 = vld [vmem:[%s2 + $0x88] sm:$0xff]
  %v54 = vld [vmem:[%s2 + $0x90] sm:$0xff]
  %v55 = vld [vmem:[%s2 + $0x98] sm:$0xff]
  %v56 = vld [vmem:[%s2 + $0xa0] sm:$0xff]
  %v57 = vld [vmem:[%s2 + $0xa8] sm:$0xff]
  %v58 = vld [vmem:[%s2 + $0xb0] sm:$0xff]
  %v59 = vld [vmem:[%s2 + $0xb8] sm:$0xff]
  %v60 = vld [vmem:[%s2 + $0xc0] sm:$0xff]
  %v61 = vld [vmem:[%s2 + $0xc8] sm:$0xff]
  %v62 = vld [vmem:[%s2 + $0xd0] sm:$0xff]
  %v63 = vld [vmem:[%s2 + $0xd8] sm:$0xff]
  %v64 = vld [vmem:[%s2 + $0xe0] sm:$0xff]
  %v65 = vld [vmem:[%s2 + $0xe8] sm:$0xff]
  %v66 = vld [vmem:[%s2 + $0xf0] sm:$0xff]
  %v67 = vld [vmem:[%s2 + $0xf8] sm:$0xff]
  %v68 = vld [vmem:[%s2 + $0x100] sm:$0xff]
  %v69 = vld [vmem:[%s2 + $0x108] sm:$0xff]
  %v70 = vld [vmem:[%s2 + $0x110] sm:$0xff]
  %v71 = vld [vmem:[%s2 + $0x118] sm:$0xff]
  %v72 = vld [vmem:[%s2 + $0x120] sm:$0xff]
  %v73 = vld [vmem:[%s2 + $0x128] sm:$0xff]
  %v74 = vld [vmem:[%s2 + $0x130] sm:$0xff]
  %v75 = vld [vmem:[%s2 + $0x138] sm:$0xff]
  %v76 = vld [vmem:[%s2 + $0x140] sm:$0xff]
  %v77 = vld [vmem:[%s2 + $0x148] sm:$0xff]
  %v78 = vld [vmem:[%s2 + $0x150] sm:$0xff]
  %v79 = vld [vmem:[%s2 + $0x158] sm:$0xff]
  %v80 = vld [vmem:[%s2 + $0x160] sm:$0xff]
  %v81 = vld [vmem:[%s2 + $0x168] sm:$0xff]
  %v82 = vld [vmem:[%s2 + $0x170] sm:$0xff]
  %v83 = vld [vmem:[%s2 + $0x178] sm:$0xff]
  %v84 = vld [vmem:[%s2 + $0x180] sm:$0xff]
  %v85 = vld [vmem:[%s2 + $0x188] sm:$0xff]
  %v86 = vld [vmem:[%s2 + $0x190] sm:$0xff]
  %v87 = vld [vmem:[%s2 + $0x198] sm:$0xff]
  %v88 = vld [vmem:[%s2 + $0x1a0] sm:$0xf]
  %v89 = vld [vmem:[%s3] sm:$0xff]
  %v90 = vld [vmem:[%s3 + $0x8] sm:$0xff]
  %v91 = vld [vmem:[%s3 + $0x10] sm:$0xff]
  %v92 = vld [vmem:[%s3 + $0x18] sm:$0xff]
  %v93 = vld [vmem:[%s3 + $0x20] sm:$0xff]
  %v94 = vld [vmem:[%s3 + $0x28] sm:$0xff]
  %v95 = vld [vmem:[%s3 + $0x30] sm:$0xff]
  %v96 = vld [vmem:[%s3 + $0x38] sm:$0xff]
  %v97 = vld [vmem:[%s3 + $0x40] sm:$0xff]
  %v98 = vld [vmem:[%s3 + $0x48] sm:$0xff]
  %v99 = vld [vmem:[%s3 + $0x50] sm:$0xff]
  %v100 = vld [vmem:[%s3 + $0x58] sm:$0xff]
  %v101 = vld [vmem:[%s3 + $0x60] sm:$0xff]
  %v102 = vld [vmem:[%s3 + $0x68] sm:$0xff]
  %v103 = vld [vmem:[%s3 + $0x70] sm:$0xff]
  %v104 = vld [vmem:[%s3 + $0x78] sm:$0xff]
  %v105 = vld [vmem:[%s3 + $0x80] sm:$0xff]
  %v106 = vld [vmem:[%s3 + $0x88] sm:$0xff]
  %v107 = vld [vmem:[%s3 + $0x90] sm:$0xff]
  %v108 = vld [vmem:[%s3 + $0x98] sm:$0xff]
  %v109 = vld [vmem:[%s3 + $0xa0] sm:$0xff]
  %v110 = vld [vmem:[%s3 + $0xa8] sm:$0xff]
  %v111 = vld [vmem:[%s3 + $0xb0] sm:$0xff]
  %v112 = vld [vmem:[%s3 + $0xb8] sm:$0xff]
  %v113 = vld [vmem:[%s3 + $0xc0] sm:$0xff]
  %v114 = vld [vmem:[%s3 + $0xc8] sm:$0xff]
  %v115 = vld [vmem:[%s3 + $0xd0] sm:$0xff]
  %v116 = vld [vmem:[%s3 + $0xd8] sm:$0xff]
  %v117 = vld [vmem:[%s3 + $0xe0] sm:$0xff]
  %v118 = vld [vmem:[%s3 + $0xe8] sm:$0xff]
  %v119 = vld [vmem:[%s3 + $0xf0] sm:$0xff]
  %v120 = vld [vmem:[%s3 + $0xf8] sm:$0xff]
  %v121 = vld [vmem:[%s3 + $0x100] sm:$0xff]
  %v122 = vld [vmem:[%s3 + $0x108] sm:$0xff]
  %v123 = vld [vmem:[%s3 + $0x110] sm:$0xff]
  %v124 = vld [vmem:[%s3 + $0x118] sm:$0xff]
  %v125 = vld [vmem:[%s3 + $0x120] sm:$0xff]
  %v126 = vld [vmem:[%s3 + $0x128] sm:$0xff]
  %v127 = vld [vmem:[%s3 + $0x130] sm:$0xff]
  %v128 = vld [vmem:[%s3 + $0x138] sm:$0xff]
  %v129 = vld [vmem:[%s3 + $0x140] sm:$0xff]
  %v130 = vld [vmem:[%s3 + $0x148] sm:$0xff]
  %v131 = vld [vmem:[%s3 + $0x150] sm:$0xff]
  %v132 = vld [vmem:[%s3 + $0x158] sm:$0xff]
  %v133 = vld [vmem:[%s3 + $0x160] sm:$0xff]
  %v134 = vld [vmem:[%s3 + $0x168] sm:$0xff]
  %v135 = vld [vmem:[%s3 + $0x170] sm:$0xff]
  %v136 = vld [vmem:[%s3 + $0x178] sm:$0xff]
  %v137 = vld [vmem:[%s3 + $0x180] sm:$0xff]
  %v138 = vld [vmem:[%s3 + $0x188] sm:$0xff]
  %v139 = vld [vmem:[%s3 + $0x190] sm:$0xff]
  %v140 = vld [vmem:[%s3 + $0x198] sm:$0xff]
  %v141 = vld [vmem:[%s3 + $0x1a0] sm:$0xf]
  %vm142 = vcmask 293888
  %v144 = vsel %vm142, %v23, 0
  %v147 = vsel %vm142, %v27, 0
  %vm149 = vcmask 1043456
  %v151 = vsel %vm149, %v88, 0
  %153 = vmatprep.subr.mxu0 0.0
  %154 = vmatpush1.msra.mxu0 %v36
  %155 = vmatprep.subr.mxu0 0.0
  %156 = vmatpush1.msra.mxu0 %v37
  %157 = vmatprep.subr.mxu0 0.0
  %158 = vmatpush1.msra.mxu0 %v38
  %159 = vmatprep.subr.mxu0 0.0
  %160 = vmatpush1.msra.mxu0 %v39
  %161 = vmatprep.subr.mxu0 0.0
  %162 = vmatpush1.msra.mxu0 %v40
  %163 = vmatprep.subr.mxu0 0.0
  %164 = vmatpush1.msra.mxu0 %v41
  %165 = vmatprep.subr.mxu0 0.0
  %166 = vmatpush1.msra.mxu0 %v42
  %167 = vmatprep.subr.mxu0 0.0
  %168 = vmatpush1.msra.mxu0 %v43
  %169 = vmatprep.subr.mxu0 0.0
  %170 = vmatpush1.msra.mxu0 %v44
  %171 = vmatprep.subr.mxu0 0.0
  %172 = vmatpush1.msra.mxu0 %v45
  %173 = vmatprep.subr.mxu0 0.0
  %174 = vmatpush1.msra.mxu0 %v46
  %175 = vmatprep.subr.mxu0 0.0
  %176 = vmatpush1.msra.mxu0 %v47
  %177 = vmatprep.subr.mxu0 0.0
  %178 = vmatpush1.msra.mxu0 %v48
  %179 = vmatprep.subr.mxu0 0.0
  %180 = vmatpush1.msra.mxu0 %v49
  %181 = vmatprep.subr.mxu0 0.0
  %182 = vmatpush1.msra.mxu0 %v50
  %183 = vmatprep.subr.mxu0 0.0
  %184 = vmatpush1.msra.mxu0 %v51
  %185 = vmatprep.subr.mxu0 0.0
  %186 = vmatpush1.msra.mxu0 %v52
  %187 = vmatprep.subr.mxu0 0.0
  %188 = vmatpush1.msra.mxu0 %v53
  %189 = vmatprep.subr.mxu0 0.0
  %190 = vmatpush1.msra.mxu0 %v54
  %191 = vmatprep.subr.mxu0 0.0
  %192 = vmatpush1.msra.mxu0 %v55
  %193 = vmatprep.subr.mxu0 0.0
  %194 = vmatpush1.msra.mxu0 %v56
  %195 = vmatprep.subr.mxu0 0.0
  %196 = vmatpush1.msra.mxu0 %v57
  %197 = vmatprep.subr.mxu0 0.0
  %198 = vmatpush1.msra.mxu0 %v58
  %199 = vmatprep.subr.mxu0 0.0
  %200 = vmatpush1.msra.mxu0 %v59
  %201 = vmatprep.subr.mxu0 0.0
  %202 = vmatpush1.msra.mxu0 %v60
  %203 = vmatprep.subr.mxu0 0.0
  %204 = vmatpush1.msra.mxu0 %v61
  %205 = vmatprep.subr.mxu0 0.0
  %206 = vmatpush1.msra.mxu0 %v62
  %207 = vmatprep.subr.mxu0 0.0
  %208 = vmatpush1.msra.mxu0 %v63
  %209 = vmatprep.subr.mxu0 0.0
  %210 = vmatpush1.msra.mxu0 %v64
  %211 = vmatprep.subr.mxu0 0.0
  %212 = vmatpush1.msra.mxu0 %v65
  %213 = vmatprep.subr.mxu0 0.0
  %214 = vmatpush1.msra.mxu0 %v66
  %215 = vmatprep.subr.mxu0 0.0
  %216 = vmatpush1.msra.mxu0 %v67
  %217 = vmatprep.mubr.f32.mxu0 %v21
  %218 = vmatmul.mubr.f32.gmra.mrb[0].mxu0 %v20
  %v219 = vpop.f32.mrb[0].mxu0
  %v220 = vadd.f32 0.0, %v219
  %v221 = vpop.f32.mrb[0].mxu0
  %222 = vmatprep.mubr.f32.mxu0 %v25
  %223 = vmatmul.mubr.f32.gmra.mrb[0].mxu0 %v24
  %v224 = vpop.f32.mrb[0].mxu0
  %v225 = vadd.f32 0.0, %v224
  %v226 = vpop.f32.mrb[0].mxu0
  %227 = vdwg.mxu0
  %228 = vmatprep.subr.mxu0 0.0
  %229 = vmatpush1.msra.mxu0 %v68
  %230 = vmatprep.subr.mxu0 0.0
  %231 = vmatpush1.msra.mxu0 %v69
  %232 = vmatprep.subr.mxu0 0.0
  %233 = vmatpush1.msra.mxu0 %v70
  %234 = vmatprep.subr.mxu0 0.0
  %235 = vmatpush1.msra.mxu0 %v71
  %236 = vmatprep.subr.mxu0 0.0
  %237 = vmatpush1.msra.mxu0 %v72
  %238 = vmatprep.subr.mxu0 0.0
  %239 = vmatpush1.msra.mxu0 %v73
  %240 = vmatprep.subr.mxu0 0.0
  %241 = vmatpush1.msra.mxu0 %v74
  %242 = vmatprep.subr.mxu0 0.0
  %243 = vmatpush1.msra.mxu0 %v75
  %244 = vmatprep.subr.mxu0 0.0
  %245 = vmatpush1.msra.mxu0 %v76
  %246 = vmatprep.subr.mxu0 0.0
  %247 = vmatpush1.msra.mxu0 %v77
  %248 = vmatprep.subr.mxu0 0.0
  %249 = vmatpush1.msra.mxu0 %v78
  %250 = vmatprep.subr.mxu0 0.0
  %251 = vmatpush1.msra.mxu0 %v79
  %252 = vmatprep.subr.mxu0 0.0
  %253 = vmatpush1.msra.mxu0 %v80
  %254 = vmatprep.subr.mxu0 0.0
  %255 = vmatpush1.msra.mxu0 %v81
  %256 = vmatprep.subr.mxu0 0.0
  %257 = vmatpush1.msra.mxu0 %v82
  %258 = vmatprep.subr.mxu0 0.0
  %259 = vmatpush1.msra.mxu0 %v83
  %260 = vmatprep.subr.mxu0 0.0
  %261 = vmatpush1.msra.mxu0 %v84
  %262 = vmatprep.subr.mxu0 0.0
  %263 = vmatpush1.msra.mxu0 %v85
  %264 = vmatprep.subr.mxu0 0.0
  %265 = vmatpush1.msra.mxu0 %v86
  %266 = vmatprep.subr.mxu0 0.0
  %267 = vmatpush1.msra.mxu0 %v87
  %268 = vmatprep.subr.mxu0 0.0
  %269 = vmatpush1.msra.mxu0 %v151
  %270 = vmatprep.subr.mxu0 0.0
  %271 = vmatpush1.msra.mxu0 0.0
  %272 = vmatprep.subr.mxu0 0.0
  %273 = vmatpush1.msra.mxu0 0.0
  %274 = vmatprep.subr.mxu0 0.0
  %275 = vmatpush1.msra.mxu0 0.0
  %276 = vmatprep.subr.mxu0 0.0
  %277 = vmatpush1.msra.mxu0 0.0
  %278 = vmatprep.subr.mxu0 0.0
  %279 = vmatpush1.msra.mxu0 0.0
  %280 = vmatprep.subr.mxu0 0.0
  %281 = vmatpush1.msra.mxu0 0.0
  %282 = vmatprep.subr.mxu0 0.0
  %283 = vmatpush1.msra.mxu0 0.0
  %284 = vmatprep.subr.mxu0 0.0
  %285 = vmatpush1.msra.mxu0 0.0
  %286 = vmatprep.subr.mxu0 0.0
  %287 = vmatpush1.msra.mxu0 0.0
  %288 = vmatprep.subr.mxu0 0.0
  %289 = vmatpush1.msra.mxu0 0.0
  %290 = vmatprep.subr.mxu0 0.0
  %291 = vmatpush1.msra.mxu0 0.0
  %292 = vmatprep.mubr.f32.mxu0 %v144
  %293 = vmatmul.mubr.f32.gmra.mrb[0].mxu0 %v22
  %v294 = vpop.f32.mrb[0].mxu0
  %v295 = vadd.f32 %v220, %v294
  %v296 = vpop.f32.mrb[0].mxu0
  %297 = vmatprep.mubr.f32.mxu0 %v147
  %298 = vmatmul.mubr.f32.gmra.mrb[0].mxu0 %v26
  %v299 = vpop.f32.mrb[0].mxu0
  %v300 = vadd.f32 %v225, %v299
  %v301 = vpop.f32.mrb[0].mxu0
  %302 = vdwg.mxu0
  %v304 = vsel %vm149, %v141, 0
  %306 = vmatprep.subr.mxu0 0.0
  %307 = vmatpush1.msra.mxu0 %v89
  %308 = vmatprep.subr.mxu0 0.0
  %309 = vmatpush1.msra.mxu0 %v90
  %310 = vmatprep.subr.mxu0 0.0
  %311 = vmatpush1.msra.mxu0 %v91
  %312 = vmatprep.subr.mxu0 0.0
  %313 = vmatpush1.msra.mxu0 %v92
  %314 = vmatprep.subr.mxu0 0.0
  %315 = vmatpush1.msra.mxu0 %v93
  %316 = vmatprep.subr.mxu0 0.0
  %317 = vmatpush1.msra.mxu0 %v94
  %318 = vmatprep.subr.mxu0 0.0
  %319 = vmatpush1.msra.mxu0 %v95
  %320 = vmatprep.subr.mxu0 0.0
  %321 = vmatpush1.msra.mxu0 %v96
  %322 = vmatprep.subr.mxu0 0.0
  %323 = vmatpush1.msra.mxu0 %v97
  %324 = vmatprep.subr.mxu0 0.0
  %325 = vmatpush1.msra.mxu0 %v98
  %326 = vmatprep.subr.mxu0 0.0
  %327 = vmatpush1.msra.mxu0 %v99
  %328 = vmatprep.subr.mxu0 0.0
  %329 = vmatpush1.msra.mxu0 %v100
  %330 = vmatprep.subr.mxu0 0.0
  %331 = vmatpush1.msra.mxu0 %v101
  %332 = vmatprep.subr.mxu0 0.0
  %333 = vmatpush1.msra.mxu0 %v102
  %334 = vmatprep.subr.mxu0 0.0
  %335 = vmatpush1.msra.mxu0 %v103
  %336 = vmatprep.subr.mxu0 0.0
  %337 = vmatpush1.msra.mxu0 %v104
  %338 = vmatprep.subr.mxu0 0.0
  %339 = vmatpush1.msra.mxu0 %v105
  %340 = vmatprep.subr.mxu0 0.0
  %341 = vmatpush1.msra.mxu0 %v106
  %342 = vmatprep.subr.mxu0 0.0
  %343 = vmatpush1.msra.mxu0 %v107
  %344 = vmatprep.subr.mxu0 0.0
  %345 = vmatpush1.msra.mxu0 %v108
  %346 = vmatprep.subr.mxu0 0.0
  %347 = vmatpush1.msra.mxu0 %v109
  %348 = vmatprep.subr.mxu0 0.0
  %349 = vmatpush1.msra.mxu0 %v110
  %350 = vmatprep.subr.mxu0 0.0
  %351 = vmatpush1.msra.mxu0 %v111
  %352 = vmatprep.subr.mxu0 0.0
  %353 = vmatpush1.msra.mxu0 %v112
  %354 = vmatprep.subr.mxu0 0.0
  %355 = vmatpush1.msra.mxu0 %v113
  %356 = vmatprep.subr.mxu0 0.0
  %357 = vmatpush1.msra.mxu0 %v114
  %358 = vmatprep.subr.mxu0 0.0
  %359 = vmatpush1.msra.mxu0 %v115
  %360 = vmatprep.subr.mxu0 0.0
  %361 = vmatpush1.msra.mxu0 %v116
  %362 = vmatprep.subr.mxu0 0.0
  %363 = vmatpush1.msra.mxu0 %v117
  %364 = vmatprep.subr.mxu0 0.0
  %365 = vmatpush1.msra.mxu0 %v118
  %366 = vmatprep.subr.mxu0 0.0
  %367 = vmatpush1.msra.mxu0 %v119
  %368 = vmatprep.subr.mxu0 0.0
  %369 = vmatpush1.msra.mxu0 %v120
  %370 = vmatprep.mubr.f32.mxu0 %v21
  %371 = vmatmul.mubr.f32.gmra.mrb[0].mxu0 %v20
  %v372 = vpop.f32.mrb[0].mxu0
  %v373 = vadd.f32 0.0, %v372
  %v374 = vpop.f32.mrb[0].mxu0
  %375 = vmatprep.mubr.f32.mxu0 %v25
  %376 = vmatmul.mubr.f32.gmra.mrb[0].mxu0 %v24
  %v377 = vpop.f32.mrb[0].mxu0
  %v378 = vadd.f32 0.0, %v377
  %v379 = vpop.f32.mrb[0].mxu0
  %380 = vdwg.mxu0
  %381 = vmatprep.subr.mxu0 0.0
  %382 = vmatpush1.msra.mxu0 %v121
  %383 = vmatprep.subr.mxu0 0.0
  %384 = vmatpush1.msra.mxu0 %v122
  %385 = vmatprep.subr.mxu0 0.0
  %386 = vmatpush1.msra.mxu0 %v123
  %387 = vmatprep.subr.mxu0 0.0
  %388 = vmatpush1.msra.mxu0 %v124
  %389 = vmatprep.subr.mxu0 0.0
  %390 = vmatpush1.msra.mxu0 %v125
  %391 = vmatprep.subr.mxu0 0.0
  %392 = vmatpush1.msra.mxu0 %v126
  %393 = vmatprep.subr.mxu0 0.0
  %394 = vmatpush1.msra.mxu0 %v127
  %395 = vmatprep.subr.mxu0 0.0
  %396 = vmatpush1.msra.mxu0 %v128
  %397 = vmatprep.subr.mxu0 0.0
  %398 = vmatpush1.msra.mxu0 %v129
  %399 = vmatprep.subr.mxu0 0.0
  %400 = vmatpush1.msra.mxu0 %v130
  %401 = vmatprep.subr.mxu0 0.0
  %402 = vmatpush1.msra.mxu0 %v131
  %403 = vmatprep.subr.mxu0 0.0
  %404 = vmatpush1.msra.mxu0 %v132
  %405 = vmatprep.subr.mxu0 0.0
  %406 = vmatpush1.msra.mxu0 %v133
  %407 = vmatprep.subr.mxu0 0.0
  %408 = vmatpush1.msra.mxu0 %v134
  %409 = vmatprep.subr.mxu0 0.0
  %410 = vmatpush1.msra.mxu0 %v135
  %411 = vmatprep.subr.mxu0 0.0
  %412 = vmatpush1.msra.mxu0 %v136
  %413 = vmatprep.subr.mxu0 0.0
  %414 = vmatpush1.msra.mxu0 %v137
  %415 = vmatprep.subr.mxu0 0.0
  %416 = vmatpush1.msra.mxu0 %v138
  %417 = vmatprep.subr.mxu0 0.0
  %418 = vmatpush1.msra.mxu0 %v139
  %419 = vmatprep.subr.mxu0 0.0
  %420 = vmatpush1.msra.mxu0 %v140
  %421 = vmatprep.subr.mxu0 0.0
  %422 = vmatpush1.msra.mxu0 %v304
  %423 = vmatprep.subr.mxu0 0.0
  %424 = vmatpush1.msra.mxu0 0.0
  %425 = vmatprep.subr.mxu0 0.0
  %426 = vmatpush1.msra.mxu0 0.0
  %427 = vmatprep.subr.mxu0 0.0
  %428 = vmatpush1.msra.mxu0 0.0
  %429 = vmatprep.subr.mxu0 0.0
  %430 = vmatpush1.msra.mxu0 0.0
  %431 = vmatprep.subr.mxu0 0.0
  %432 = vmatpush1.msra.mxu0 0.0
  %433 = vmatprep.subr.mxu0 0.0
  %434 = vmatpush1.msra.mxu0 0.0
  %435 = vmatprep.subr.mxu0 0.0
  %436 = vmatpush1.msra.mxu0 0.0
  %437 = vmatprep.subr.mxu0 0.0
  %438 = vmatpush1.msra.mxu0 0.0
  %439 = vmatprep.subr.mxu0 0.0
  %440 = vmatpush1.msra.mxu0 0.0
  %441 = vmatprep.subr.mxu0 0.0
  %442 = vmatpush1.msra.mxu0 0.0
  %443 = vmatprep.subr.mxu0 0.0
  %444 = vmatpush1.msra.mxu0 0.0
  %445 = vmatprep.mubr.f32.mxu0 %v144
  %446 = vmatmul.mubr.f32.gmra.mrb[0].mxu0 %v22
  %v447 = vpop.f32.mrb[0].mxu0
  %v448 = vadd.f32 %v373, %v447
  %v449 = vpop.f32.mrb[0].mxu0
  %450 = vmatprep.mubr.f32.mxu0 %v147
  %451 = vmatmul.mubr.f32.gmra.mrb[0].mxu0 %v26
  %v452 = vpop.f32.mrb[0].mxu0
  %v453 = vadd.f32 %v378, %v452
  %v454 = vpop.f32.mrb[0].mxu0
  %455 = vdwg.mxu0
  %v456 = vmax.f32 %v295, %v448
  %v457 = vmax.f32 %v300, %v453
  %v459 = vsel %vm142, %v31, 0
  %v462 = vsel %vm142, %v35, 0
  %464 = vmatprep.subr.mxu0 0.0
  %465 = vmatpush1.msra.mxu0 %v36
  %466 = vmatprep.subr.mxu0 0.0
  %467 = vmatpush1.msra.mxu0 %v37
  %468 = vmatprep.subr.mxu0 0.0
  %469 = vmatpush1.msra.mxu0 %v38
  %470 = vmatprep.subr.mxu0 0.0
  %471 = vmatpush1.msra.mxu0 %v39
  %472 = vmatprep.subr.mxu0 0.0
  %473 = vmatpush1.msra.mxu0 %v40
  %474 = vmatprep.subr.mxu0 0.0
  %475 = vmatpush1.msra.mxu0 %v41
  %476 = vmatprep.subr.mxu0 0.0
  %477 = vmatpush1.msra.mxu0 %v42
  %478 = vmatprep.subr.mxu0 0.0
  %479 = vmatpush1.msra.mxu0 %v43
  %480 = vmatprep.subr.mxu0 0.0
  %481 = vmatpush1.msra.mxu0 %v44
  %482 = vmatprep.subr.mxu0 0.0
  %483 = vmatpush1.msra.mxu0 %v45
  %484 = vmatprep.subr.mxu0 0.0
  %485 = vmatpush1.msra.mxu0 %v46
  %486 = vmatprep.subr.mxu0 0.0
  %487 = vmatpush1.msra.mxu0 %v47
  %488 = vmatprep.subr.mxu0 0.0
  %489 = vmatpush1.msra.mxu0 %v48
  %490 = vmatprep.subr.mxu0 0.0
  %491 = vmatpush1.msra.mxu0 %v49
  %492 = vmatprep.subr.mxu0 0.0
  %493 = vmatpush1.msra.mxu0 %v50
  %494 = vmatprep.subr.mxu0 0.0
  %495 = vmatpush1.msra.mxu0 %v51
  %496 = vmatprep.subr.mxu0 0.0
  %497 = vmatpush1.msra.mxu0 %v52
  %498 = vmatprep.subr.mxu0 0.0
  %499 = vmatpush1.msra.mxu0 %v53
  %500 = vmatprep.subr.mxu0 0.0
  %501 = vmatpush1.msra.mxu0 %v54
  %502 = vmatprep.subr.mxu0 0.0
  %503 = vmatpush1.msra.mxu0 %v55
  %504 = vmatprep.subr.mxu0 0.0
  %505 = vmatpush1.msra.mxu0 %v56
  %506 = vmatprep.subr.mxu0 0.0
  %507 = vmatpush1.msra.mxu0 %v57
  %508 = vmatprep.subr.mxu0 0.0
  %509 = vmatpush1.msra.mxu0 %v58
  %510 = vmatprep.subr.mxu0 0.0
  %511 = vmatpush1.msra.mxu0 %v59
  %512 = vmatprep.subr.mxu0 0.0
  %513 = vmatpush1.msra.mxu0 %v60
  %514 = vmatprep.subr.mxu0 0.0
  %515 = vmatpush1.msra.mxu0 %v61
  %516 = vmatprep.subr.mxu0 0.0
  %517 = vmatpush1.msra.mxu0 %v62
  %518 = vmatprep.subr.mxu0 0.0
  %519 = vmatpush1.msra.mxu0 %v63
  %520 = vmatprep.subr.mxu0 0.0
  %521 = vmatpush1.msra.mxu0 %v64
  %522 = vmatprep.subr.mxu0 0.0
  %523 = vmatpush1.msra.mxu0 %v65
  %524 = vmatprep.subr.mxu0 0.0
  %525 = vmatpush1.msra.mxu0 %v66
  %526 = vmatprep.subr.mxu0 0.0
  %527 = vmatpush1.msra.mxu0 %v67
  %528 = vmatprep.mubr.f32.mxu0 %v29
  %529 = vmatmul.mubr.f32.gmra.mrb[0].mxu0 %v28
  %v530 = vpop.f32.mrb[0].mxu0
  %v531 = vadd.f32 0.0, %v530
  %v532 = vpop.f32.mrb[0].mxu0
  %533 = vmatprep.mubr.f32.mxu0 %v33
  %534 = vmatmul.mubr.f32.gmra.mrb[0].mxu0 %v32
  %v535 = vpop.f32.mrb[0].mxu0
  %v536 = vadd.f32 0.0, %v535
  %v537 = vpop.f32.mrb[0].mxu0
  %538 = vdwg.mxu0
  %539 = vmatprep.subr.mxu0 0.0
  %540 = vmatpush1.msra.mxu0 %v68
  %541 = vmatprep.subr.mxu0 0.0
  %542 = vmatpush1.msra.mxu0 %v69
  %543 = vmatprep.subr.mxu0 0.0
  %544 = vmatpush1.msra.mxu0 %v70
  %545 = vmatprep.subr.mxu0 0.0
  %546 = vmatpush1.msra.mxu0 %v71
  %547 = vmatprep.subr.mxu0 0.0
  %548 = vmatpush1.msra.mxu0 %v72
  %549 = vmatprep.subr.mxu0 0.0
  %550 = vmatpush1.msra.mxu0 %v73
  %551 = vmatprep.subr.mxu0 0.0
  %552 = vmatpush1.msra.mxu0 %v74
  %553 = vmatprep.subr.mxu0 0.0
  %554 = vmatpush1.msra.mxu0 %v75
  %555 = vmatprep.subr.mxu0 0.0
  %556 = vmatpush1.msra.mxu0 %v76
  %557 = vmatprep.subr.mxu0 0.0
  %558 = vmatpush1.msra.mxu0 %v77
  %559 = vmatprep.subr.mxu0 0.0
  %560 = vmatpush1.msra.mxu0 %v78
  %561 = vmatprep.subr.mxu0 0.0
  %562 = vmatpush1.msra.mxu0 %v79
  %563 = vmatprep.subr.mxu0 0.0
  %564 = vmatpush1.msra.mxu0 %v80
  %565 = vmatprep.subr.mxu0 0.0
  %566 = vmatpush1.msra.mxu0 %v81
  %567 = vmatprep.subr.mxu0 0.0
  %568 = vmatpush1.msra.mxu0 %v82
  %569 = vmatprep.subr.mxu0 0.0
  %570 = vmatpush1.msra.mxu0 %v83
  %571 = vmatprep.subr.mxu0 0.0
  %572 = vmatpush1.msra.mxu0 %v84
  %573 = vmatprep.subr.mxu0 0.0
  %574 = vmatpush1.msra.mxu0 %v85
  %575 = vmatprep.subr.mxu0 0.0
  %576 = vmatpush1.msra.mxu0 %v86
  %577 = vmatprep.subr.mxu0 0.0
  %578 = vmatpush1.msra.mxu0 %v87
  %579 = vmatprep.subr.mxu0 0.0
  %580 = vmatpush1.msra.mxu0 %v151
  %581 = vmatprep.subr.mxu0 0.0
  %582 = vmatpush1.msra.mxu0 0.0
  %583 = vmatprep.subr.mxu0 0.0
  %584 = vmatpush1.msra.mxu0 0.0
  %585 = vmatprep.subr.mxu0 0.0
  %586 = vmatpush1.msra.mxu0 0.0
  %587 = vmatprep.subr.mxu0 0.0
  %588 = vmatpush1.msra.mxu0 0.0
  %589 = vmatprep.subr.mxu0 0.0
  %590 = vmatpush1.msra.mxu0 0.0
  %591 = vmatprep.subr.mxu0 0.0
  %592 = vmatpush1.msra.mxu0 0.0
  %593 = vmatprep.subr.mxu0 0.0
  %594 = vmatpush1.msra.mxu0 0.0
  %595 = vmatprep.subr.mxu0 0.0
  %596 = vmatpush1.msra.mxu0 0.0
  %597 = vmatprep.subr.mxu0 0.0
  %598 = vmatpush1.msra.mxu0 0.0
  %599 = vmatprep.subr.mxu0 0.0
  %600 = vmatpush1.msra.mxu0 0.0
  %601 = vmatprep.subr.mxu0 0.0
  %602 = vmatpush1.msra.mxu0 0.0
  %603 = vmatprep.mubr.f32.mxu0 %v459
  %604 = vmatmul.mubr.f32.gmra.mrb[0].mxu0 %v30
  %v605 = vpop.f32.mrb[0].mxu0
  %v606 = vadd.f32 %v531, %v605
  %v607 = vpop.f32.mrb[0].mxu0
  %608 = vmatprep.mubr.f32.mxu0 %v462
  %609 = vmatmul.mubr.f32.gmra.mrb[0].mxu0 %v34
  %v610 = vpop.f32.mrb[0].mxu0
  %v611 = vadd.f32 %v536, %v610
  %v612 = vpop.f32.mrb[0].mxu0
  %613 = vdwg.mxu0
  %614 = vmatprep.subr.mxu0 0.0
  %615 = vmatpush1.msra.mxu0 %v89
  %616 = vmatprep.subr.mxu0 0.0
  %617 = vmatpush1.msra.mxu0 %v90
  %618 = vmatprep.subr.mxu0 0.0
  %619 = vmatpush1.msra.mxu0 %v91
  %620 = vmatprep.subr.mxu0 0.0
  %621 = vmatpush1.msra.mxu0 %v92
  %622 = vmatprep.subr.mxu0 0.0
  %623 = vmatpush1.msra.mxu0 %v93
  %624 = vmatprep.subr.mxu0 0.0
  %625 = vmatpush1.msra.mxu0 %v94
  %626 = vmatprep.subr.mxu0 0.0
  %627 = vmatpush1.msra.mxu0 %v95
  %628 = vmatprep.subr.mxu0 0.0
  %629 = vmatpush1.msra.mxu0 %v96
  %630 = vmatprep.subr.mxu0 0.0
  %631 = vmatpush1.msra.mxu0 %v97
  %632 = vmatprep.subr.mxu0 0.0
  %633 = vmatpush1.msra.mxu0 %v98
  %634 = vmatprep.subr.mxu0 0.0
  %635 = vmatpush1.msra.mxu0 %v99
  %636 = vmatprep.subr.mxu0 0.0
  %637 = vmatpush1.msra.mxu0 %v100
  %638 = vmatprep.subr.mxu0 0.0
  %639 = vmatpush1.msra.mxu0 %v101
  %640 = vmatprep.subr.mxu0 0.0
  %641 = vmatpush1.msra.mxu0 %v102
  %642 = vmatprep.subr.mxu0 0.0
  %643 = vmatpush1.msra.mxu0 %v103
  %644 = vmatprep.subr.mxu0 0.0
  %645 = vmatpush1.msra.mxu0 %v104
  %646 = vmatprep.subr.mxu0 0.0
  %647 = vmatpush1.msra.mxu0 %v105
  %648 = vmatprep.subr.mxu0 0.0
  %649 = vmatpush1.msra.mxu0 %v106
  %650 = vmatprep.subr.mxu0 0.0
  %651 = vmatpush1.msra.mxu0 %v107
  %652 = vmatprep.subr.mxu0 0.0
  %653 = vmatpush1.msra.mxu0 %v108
  %654 = vmatprep.subr.mxu0 0.0
  %655 = vmatpush1.msra.mxu0 %v109
  %656 = vmatprep.subr.mxu0 0.0
  %657 = vmatpush1.msra.mxu0 %v110
  %658 = vmatprep.subr.mxu0 0.0
  %659 = vmatpush1.msra.mxu0 %v111
  %660 = vmatprep.subr.mxu0 0.0
  %661 = vmatpush1.msra.mxu0 %v112
  %662 = vmatprep.subr.mxu0 0.0
  %663 = vmatpush1.msra.mxu0 %v113
  %664 = vmatprep.subr.mxu0 0.0
  %665 = vmatpush1.msra.mxu0 %v114
  %666 = vmatprep.subr.mxu0 0.0
  %667 = vmatpush1.msra.mxu0 %v115
  %668 = vmatprep.subr.mxu0 0.0
  %669 = vmatpush1.msra.mxu0 %v116
  %670 = vmatprep.subr.mxu0 0.0
  %671 = vmatpush1.msra.mxu0 %v117
  %672 = vmatprep.subr.mxu0 0.0
  %673 = vmatpush1.msra.mxu0 %v118
  %674 = vmatprep.subr.mxu0 0.0
  %675 = vmatpush1.msra.mxu0 %v119
  %676 = vmatprep.subr.mxu0 0.0
  %677 = vmatpush1.msra.mxu0 %v120
  %678 = vmatprep.mubr.f32.mxu0 %v29
  %679 = vmatmul.mubr.f32.gmra.mrb[0].mxu0 %v28
  %v680 = vpop.f32.mrb[0].mxu0
  %v681 = vadd.f32 0.0, %v680
  %v682 = vpop.f32.mrb[0].mxu0
  %683 = vmatprep.mubr.f32.mxu0 %v33
  %684 = vmatmul.mubr.f32.gmra.mrb[0].mxu0 %v32
  %v685 = vpop.f32.mrb[0].mxu0
  %v686 = vadd.f32 0.0, %v685
  %v687 = vpop.f32.mrb[0].mxu0
  %688 = vdwg.mxu0
  %689 = vmatprep.subr.mxu0 0.0
  %690 = vmatpush1.msra.mxu0 %v121
  %691 = vmatprep.subr.mxu0 0.0
  %692 = vmatpush1.msra.mxu0 %v122
  %693 = vmatprep.subr.mxu0 0.0
  %694 = vmatpush1.msra.mxu0 %v123
  %695 = vmatprep.subr.mxu0 0.0
  %696 = vmatpush1.msra.mxu0 %v124
  %697 = vmatprep.subr.mxu0 0.0
  %698 = vmatpush1.msra.mxu0 %v125
  %699 = vmatprep.subr.mxu0 0.0
  %700 = vmatpush1.msra.mxu0 %v126
  %701 = vmatprep.subr.mxu0 0.0
  %702 = vmatpush1.msra.mxu0 %v127
  %703 = vmatprep.subr.mxu0 0.0
  %704 = vmatpush1.msra.mxu0 %v128
  %705 = vmatprep.subr.mxu0 0.0
  %706 = vmatpush1.msra.mxu0 %v129
  %707 = vmatprep.subr.mxu0 0.0
  %708 = vmatpush1.msra.mxu0 %v130
  %709 = vmatprep.subr.mxu0 0.0
  %710 = vmatpush1.msra.mxu0 %v131
  %711 = vmatprep.subr.mxu0 0.0
  %712 = vmatpush1.msra.mxu0 %v132
  %713 = vmatprep.subr.mxu0 0.0
  %714 = vmatpush1.msra.mxu0 %v133
  %715 = vmatprep.subr.mxu0 0.0
  %716 = vmatpush1.msra.mxu0 %v134
  %717 = vmatprep.subr.mxu0 0.0
  %718 = vmatpush1.msra.mxu0 %v135
  %719 = vmatprep.subr.mxu0 0.0
  %720 = vmatpush1.msra.mxu0 %v136
  %721 = vmatprep.subr.mxu0 0.0
  %722 = vmatpush1.msra.mxu0 %v137
  %723 = vmatprep.subr.mxu0 0.0
  %724 = vmatpush1.msra.mxu0 %v138
  %725 = vmatprep.subr.mxu0 0.0
  %726 = vmatpush1.msra.mxu0 %v139
  %727 = vmatprep.subr.mxu0 0.0
  %728 = vmatpush1.msra.mxu0 %v140
  %729 = vmatprep.subr.mxu0 0.0
  %730 = vmatpush1.msra.mxu0 %v304
  %731 = vmatprep.subr.mxu0 0.0
  %732 = vmatpush1.msra.mxu0 0.0
  %733 = vmatprep.subr.mxu0 0.0
  %734 = vmatpush1.msra.mxu0 0.0
  %735 = vmatprep.subr.mxu0 0.0
  %736 = vmatpush1.msra.mxu0 0.0
  %737 = vmatprep.subr.mxu0 0.0
  %738 = vmatpush1.msra.mxu0 0.0
  %739 = vmatprep.subr.mxu0 0.0
  %740 = vmatpush1.msra.mxu0 0.0
  %741 = vmatprep.subr.mxu0 0.0
  %742 = vmatpush1.msra.mxu0 0.0
  %743 = vmatprep.subr.mxu0 0.0
  %744 = vmatpush1.msra.mxu0 0.0
  %745 = vmatprep.subr.mxu0 0.0
  %746 = vmatpush1.msra.mxu0 0.0
  %747 = vmatprep.subr.mxu0 0.0
  %748 = vmatpush1.msra.mxu0 0.0
  %749 = vmatprep.subr.mxu0 0.0
  %750 = vmatpush1.msra.mxu0 0.0
  %751 = vmatprep.subr.mxu0 0.0
  %752 = vmatpush1.msra.mxu0 0.0
  %753 = vmatprep.mubr.f32.mxu0 %v459
  %754 = vmatmul.mubr.f32.gmra.mrb[0].mxu0 %v30
  %v755 = vpop.f32.mrb[0].mxu0
  %v756 = vadd.f32 %v681, %v755
  %v757 = vpop.f32.mrb[0].mxu0
  %758 = vmatprep.mubr.f32.mxu0 %v462
  %759 = vmatmul.mubr.f32.gmra.mrb[0].mxu0 %v34
  %v760 = vpop.f32.mrb[0].mxu0
  %v761 = vadd.f32 %v686, %v760
  %v762 = vpop.f32.mrb[0].mxu0
  %763 = vdwg.mxu0
  %v764 = vmax.f32 %v606, %v756
  %v765 = vmax.f32 %v611, %v761
  %v766 = vmax.f32 %v456, %v764
  %v767 = vmax.f32 %v457, %v765
  %v768 = vld [vmem:[%s4] sm:$0x1]
  %v770 = vlaneseq
  %v771 = vshrl.u32 %v770, 7
  %v772 = vsub.s32 0, %v771
  %v773 = vrot.slane %v768, %v772
  %v775 = vadd.f32 %v766, %v773
  %v776 = vadd.f32 %v767, %v773
  %v777 = vmax.f32 %v775, 0.0
  %v778 = vmax.f32 %v776, 0.0
  %vm779 = vcmask 654336
  %780 = vst.msk [vmem:[%s5] sm:$0xff] %vm779, %v777
  %vm781 = vcmask 648192
  %782 = vst.msk [vmem:[%s5 + $0x8] sm:$0x3] %vm781, %v778
  // Predicated region
  $region22: #{lenet_forward.4} parent=0 // pred_check
    _
  $region23: #{lenet_forward.4} parent=0 // pred_check_branch
    %784 = sbr.rel (0) target = $region25
  $region24: #{lenet_forward.4} parent=0 // pred_region
    _
  $region25: #{lenet_forward.4} parent=0 // pred_fallthru
    _
  // Predicated region
  $region26: #{lenet_forward.4} parent=0 // pred_check
    _
  $region27: #{lenet_forward.4} parent=0 // pred_check_branch
    %786 = sbr.rel (0) target = $region29
  $region28: #{lenet_forward.4} parent=0 // pred_region
    _
  $region29: #{lenet_forward.4} parent=0 // pred_fallthru
    _

</llo_original>
